<compile_context>
chip_gen: v5e
topology: v5e:2x2
jax: 0.10.0
libtpu: 0.0.40
codegen_flags: <defaults>
</compile_context>

<pallas_src>
import math
import functools

import jax
import jax.numpy as jnp
from jax.experimental import pallas as pl
from jax.experimental.pallas import tpu as pltpu


# ---------------------------------------------------------------------------
# small helpers
# ---------------------------------------------------------------------------
def _layernorm(h, w, b, eps):
    mu = jnp.mean(h, axis=-1, keepdims=True)
    var = jnp.mean((h - mu) ** 2, axis=-1, keepdims=True)
    return (h - mu) * jax.lax.rsqrt(var + eps) * w + b


def _gelu_tanh(x):
    # TODO(synk): exact erf GELU if the reference uses nn.GELU's default form
    # (tanh approximation differs at ~1e-3 level).
    return 0.5 * x * (1.0 + jnp.tanh(0.7978845608028654 * (x + 0.044715 * x * x * x)))


def _pick_tile(full, target, quantum):
    """Largest divisor of `full` that is <= target and a multiple of `quantum`."""
    if full <= target:
        return full
    cand = (target // quantum) * quantum
    while cand >= quantum:
        if full % cand == 0:
            return cand
        cand -= quantum
    return full


@functools.lru_cache(maxsize=1)
def _vmem_capacity():
    """Per-generation VMEM capacity (bytes); conservative 64 MiB fallback."""
    try:
        info = pltpu.get_tpu_info()
        cap = getattr(info, "vmem_capacity_bytes", None)
        if cap:
            return int(cap)
    except Exception:
        pass
    return 64 << 20


@functools.lru_cache(maxsize=1)
def _single_buffer_ok():
    """Probe (compile + run) whether pipeline_mode=pl.Buffered(1) works here."""
    if not hasattr(pl, "Buffered"):
        return False
    try:
        spec = pl.BlockSpec((8, 128), lambda i: (0, 0), pipeline_mode=pl.Buffered(1))

        def _k(x_ref, o_ref):
            o_ref[...] = x_ref[...] + 1.0

        out = pl.pallas_call(
            _k,
            out_shape=jax.ShapeDtypeStruct((8, 128), jnp.float32),
            grid=(2,),
            in_specs=[spec],
            out_specs=pl.BlockSpec((8, 128), lambda i: (0, 0)),
        )(jnp.zeros((8, 128), jnp.float32))
        jax.block_until_ready(out)
        return True
    except Exception:
        return False


def _wbuf():
    return 1 if _single_buffer_ok() else 2


def _weight_spec(shape):
    """Grid-invariant weight block: single-buffered when supported (halves its VMEM).

    TODO(synk): if Buffered(1) is unsupported AND the weight is large (e.g. w_qkv at
    C>=2048 on v7x), stream it manually from pl.ANY instead of double-buffering.
    """
    index_map = lambda *_: (0,) * len(shape)
    if _single_buffer_ok():
        return pl.BlockSpec(shape, index_map, pipeline_mode=pl.Buffered(1))
    return pl.BlockSpec(shape, index_map)


def _compiler_params(sem, est_bytes):
    # Scoped-VMEM limit sized from the tile working set (+4 MiB headroom), clamped to
    # the queried per-generation capacity minus 8 MiB of compiler-internal headroom.
    cap = _vmem_capacity()
    hi = max(cap - (8 << 20), 16 << 20)
    limit = int(min(max(int(est_bytes) + (4 << 20), 32 << 20), hi))
    return pltpu.CompilerParams(dimension_semantics=sem, vmem_limit_bytes=limit)


# ---------------------------------------------------------------------------
# Pallas kernels
# ---------------------------------------------------------------------------
def qkv_kernel(x_ref, ln1w_ref, ln1b_ref, wqkv_ref, bqkv_ref,
               q_ref, k_ref, v_ref, *, n_embd: int, eps: float):
    # LN in f32, matmul operands bf16 (f32 accumulation on the MXU).
    h = _layernorm(x_ref[...].astype(jnp.float32), ln1w_ref[0], ln1b_ref[0], eps)
    qkv = jnp.dot(h.astype(jnp.bfloat16), wqkv_ref[...],
                  preferred_element_type=jnp.float32) + bqkv_ref[0]
    qkv = qkv.astype(jnp.bfloat16)
    # 1/sqrt(hd) is pre-folded into the Q columns of w_qkv / b_qkv.
    q_ref[...] = qkv[:, 0 * n_embd:1 * n_embd]
    k_ref[...] = qkv[:, 1 * n_embd:2 * n_embd]
    v_ref[...] = qkv[:, 2 * n_embd:3 * n_embd]


def attn_core_kernel(x_ref, q_ref, k_ref, v_ref, wproj_ref, bproj_ref, out_ref,
                     qh_sc, m_sc, l_sc, acc_sc, *, n_head: int):
    qi = pl.program_id(1)
    ki = pl.program_id(2)
    _, tq, C = q_ref.shape
    _, tk, _ = k_ref.shape
    hd = C // n_head

    @pl.when(ki == 0)
    def _():
        # Head-major Q relayout (single reshape + swapaxes), done once per q tile.
        qh_sc[...] = jnp.swapaxes(q_ref[0].reshape(tq, n_head, hd), 0, 1)
        m_sc[...] = jnp.full(m_sc.shape, -jnp.inf, dtype=m_sc.dtype)
        l_sc[...] = jnp.zeros_like(l_sc)
        acc_sc[...] = jnp.zeros_like(acc_sc)

    # Causal tile skip: a KV tile contributes only if its first key position is <= the
    # last query position of this q tile.  (Compute skipped; DMA still pipelined.)
    # TODO(synk): also skip the DMA for fully-masked KV tiles via a data-dependent
    # index_map when T gets very large.
    @pl.when(ki * tk < (qi + 1) * tq)
    def _():
        kh = jnp.swapaxes(k_ref[0].reshape(tk, n_head, hd), 0, 1)   # (nh, tk, hd)
        vh = jnp.swapaxes(v_ref[0].reshape(tk, n_head, hd), 0, 1)   # (nh, tk, hd)

        s = jnp.einsum("hqd,hkd->hqk", qh_sc[...], kh,
                       preferred_element_type=jnp.float32)          # (nh, tq, tk)
        row = qi * tq + jax.lax.broadcasted_iota(jnp.int32, (tq, tk), 0)
        col = ki * tk + jax.lax.broadcasted_iota(jnp.int32, (tq, tk), 1)
        s = jnp.where((row >= col)[None, :, :], s, -1e30)           # finite mask

        m_prev = m_sc[...]
        m_new = jnp.maximum(m_prev, jnp.max(s, axis=-1, keepdims=True))
        alpha = jnp.exp(m_prev - m_new)                              # f32 (EUP)
        p = jnp.exp(s - m_new)
        l_sc[...] = alpha * l_sc[...] + jnp.sum(p, axis=-1, keepdims=True)
        acc_sc[...] = alpha * acc_sc[...] + jnp.einsum(
            "hqk,hkd->hqd", p.astype(jnp.bfloat16), vh,
            preferred_element_type=jnp.float32)
        m_sc[...] = m_new

    @pl.when(ki == pl.num_programs(2) - 1)
    def _():
        y = acc_sc[...] * pl.reciprocal(l_sc[...], approx=False)     # (nh, tq, hd)
        y = jnp.swapaxes(y, 0, 1).reshape(tq, C)                     # (tq, C), one relayout
        out = (x_ref[0].astype(jnp.float32)
               + jnp.dot(y.astype(jnp.bfloat16), wproj_ref[...],
                         preferred_element_type=jnp.float32)
               + bproj_ref[0])
        out_ref[0] = out.astype(out_ref.dtype)


def mlp_kernel(x_ref, ln2w_ref, ln2b_ref, wfc_ref, bfc_ref, wout_ref, bout_ref,
               out_ref, h2_sc, acc_sc, *, eps: float):
    f = pl.program_id(1)                           # dim_ff reduction axis (arbitrary)

    @pl.when(f == 0)
    def _():
        h2 = _layernorm(x_ref[...].astype(jnp.float32), ln2w_ref[0], ln2b_ref[0], eps)
        h2_sc[...] = h2.astype(jnp.bfloat16)
        acc_sc[...] = jnp.zeros_like(acc_sc)

    hfc = jnp.dot(h2_sc[...], wfc_ref[...],
                  preferred_element_type=jnp.float32) + bfc_ref[0]
    hfc = _gelu_tanh(hfc)                                            # f32 GELU
    acc_sc[...] += jnp.dot(hfc.astype(jnp.bfloat16), wout_ref[...],
                           preferred_element_type=jnp.float32)

    @pl.when(f == pl.num_programs(1) - 1)
    def _():
        out_ref[...] = (x_ref[...].astype(jnp.float32) + acc_sc[...]
                        + bout_ref[0]).astype(out_ref.dtype)


def lm_head_kernel(x_ref, lnfw_ref, lnfb_ref, wte_ref, out_ref, *, eps: float):
    # LN recomputed per vocab tile (cheap vs the matmul).  logits tile = h @ wte_tile.T
    # (weight tying; contraction over C, no materialized wte.T copy in HBM).
    h = _layernorm(x_ref[...].astype(jnp.float32), lnfw_ref[0], lnfb_ref[0], eps)
    out_ref[...] = jnp.einsum("mc,vc->mv", h.astype(jnp.bfloat16), wte_ref[...],
                              preferred_element_type=jnp.float32).astype(out_ref.dtype)


# ---------------------------------------------------------------------------
# Wrappers around pallas_call
# ---------------------------------------------------------------------------
def run_qkv(x, p, *, eps):
    """x: (B*T, C) bf16 -> q_scaled, k, v each (B*T, C) bf16."""
    M, C = x.shape
    tile_m = _pick_tile(M, 512, 8)
    est = (2 * tile_m * C * 2 * 4
           + _wbuf() * (3 * C * C * 2 + 5 * C * 4)
           + tile_m * C * 4 + tile_m * 3 * C * 6)
    return pl.pallas_call(
        functools.partial(qkv_kernel, n_embd=C, eps=eps),
        out_shape=(jax.ShapeDtypeStruct((M, C), jnp.bfloat16),
                   jax.ShapeDtypeStruct((M, C), jnp.bfloat16),
                   jax.ShapeDtypeStruct((M, C), jnp.bfloat16)),
        grid=(M // tile_m,),
        in_specs=[
            pl.BlockSpec((tile_m, C), lambda m: (m, 0)),                       # x rows
            _weight_spec(p["ln1_w"].shape), _weight_spec(p["ln1_b"].shape),
            _weight_spec(p["w_qkv"].shape), _weight_spec(p["b_qkv"].shape),
        ],
        out_specs=(pl.BlockSpec((tile_m, C), lambda m: (m, 0)),
                   pl.BlockSpec((tile_m, C), lambda m: (m, 0)),
                   pl.BlockSpec((tile_m, C), lambda m: (m, 0))),
        compiler_params=_compiler_params(("parallel",), est),
    )(x, p["ln1_w"], p["ln1_b"], p["w_qkv"], p["b_qkv"])


def run_attention(x, q, k, v, p, *, n_head):
    """Flash-style causal attention + out-proj + residual.  All (B, T, C) bf16."""
    B, T, C = x.shape
    hd = C // n_head
    tq = _pick_tile(T, 256, 8)
    tk = _pick_tile(T, 256, 8)
    est = (2 * (3 * tq * C * 2 + 2 * tk * C * 2)
           + _wbuf() * (C * C * 2 + C * 4)
           + 3 * n_head * tq * tk * 4
           + n_head * tq * (hd * 6 + 8) + tq * C * 8)
    return pl.pallas_call(
        functools.partial(attn_core_kernel, n_head=n_head),
        out_shape=jax.ShapeDtypeStruct((B, T, C), jnp.bfloat16),
        grid=(B, T // tq, T // tk),
        in_specs=[
            pl.BlockSpec((1, tq, C), lambda b, qi, ki: (b, qi, 0)),            # x residual
            pl.BlockSpec((1, tq, C), lambda b, qi, ki: (b, qi, 0)),            # q (scaled)
            pl.BlockSpec((1, tk, C), lambda b, qi, ki: (b, ki, 0)),            # k
            pl.BlockSpec((1, tk, C), lambda b, qi, ki: (b, ki, 0)),            # v
            _weight_spec(p["w_proj"].shape), _weight_spec(p["b_proj"].shape),
        ],
        out_specs=pl.BlockSpec((1, tq, C), lambda b, qi, ki: (b, qi, 0)),
        scratch_shapes=[
            pltpu.VMEM((n_head, tq, hd), jnp.bfloat16),    # head-major Q
            pltpu.VMEM((n_head, tq, 1), jnp.float32),      # running max m
            pltpu.VMEM((n_head, tq, 1), jnp.float32),      # running sum l
            pltpu.VMEM((n_head, tq, hd), jnp.float32),     # output accumulator
        ],
        compiler_params=_compiler_params(("parallel", "parallel", "arbitrary"), est),
    )(x, q, k, v, p["w_proj"], p["b_proj"])


def run_mlp(x, p, *, eps):
    """x: (B*T, C) bf16 -> (B*T, C) bf16 (LN2 + fc + GELU + proj + residual)."""
    M, C = x.shape
    F = p["w_fc"].shape[1]
    tile_m = _pick_tile(M, 256, 8)
    f_target = 2048 if _vmem_capacity() >= (100 << 20) else 512   # bigger on 128 MiB parts
    tile_f = _pick_tile(F, f_target, 128)
    est = (2 * (2 * tile_m * C * 2 + 2 * C * tile_f * 2 + tile_f * 4)
           + _wbuf() * 3 * C * 4
           + tile_m * C * 6 + 2 * tile_m * tile_f * 4)
    return pl.pallas_call(
        functools.partial(mlp_kernel, eps=eps),
        out_shape=jax.ShapeDtypeStruct((M, C), jnp.bfloat16),
        grid=(M // tile_m, F // tile_f),
        in_specs=[
            pl.BlockSpec((tile_m, C), lambda m, f: (m, 0)),                    # x rows
            _weight_spec(p["ln2_w"].shape), _weight_spec(p["ln2_b"].shape),
            pl.BlockSpec((C, tile_f), lambda m, f: (0, f)),                    # w_fc tile
            pl.BlockSpec((1, tile_f), lambda m, f: (0, f)),                    # b_fc tile
            pl.BlockSpec((tile_f, C), lambda m, f: (f, 0)),                    # w_out tile
            _weight_spec(p["b_out"].shape),
        ],
        out_specs=pl.BlockSpec((tile_m, C), lambda m, f: (m, 0)),
        scratch_shapes=[pltpu.VMEM((tile_m, C), jnp.bfloat16),                 # LN2(x) bf16
                        pltpu.VMEM((tile_m, C), jnp.float32)],                 # f32 accumulator
        compiler_params=_compiler_params(("parallel", "arbitrary"), est),
    )(x, p["ln2_w"], p["ln2_b"], p["w_fc"], p["b_fc"], p["w_out"], p["b_out"])


def run_lm_head(x, lnf_w, lnf_b, wte, *, eps, logits_dtype=jnp.float32):
    """x: (B*T, C) bf16, wte: (V, C) bf16 -> logits (B*T, V).

    Vocab is the OUTER grid axis so each wte tile is DMA'd once and stays resident
    across all row tiles; rows are B*T flattened so the MXU sees a large M dim.
    """
    M, C = x.shape
    V = wte.shape[0]
    tile_m = _pick_tile(M, 256, 8)
    tile_v = _pick_tile(V, 1024, 128)
    est = (2 * (tile_m * C * 2 + tile_v * C * 2 + tile_m * tile_v * 4)
           + _wbuf() * 2 * C * 4 + tile_m * C * 4 + tile_m * tile_v * 4)
    return pl.pallas_call(
        functools.partial(lm_head_kernel, eps=eps),
        out_shape=jax.ShapeDtypeStruct((M, V), logits_dtype),
        grid=(V // tile_v, M // tile_m),                    # vocab outermost
        in_specs=[
            pl.BlockSpec((tile_m, C), lambda v, m: (m, 0)),                    # x rows
            _weight_spec(lnf_w.shape), _weight_spec(lnf_b.shape),
            pl.BlockSpec((tile_v, C), lambda v, m: (v, 0)),                    # wte tile (resident)
        ],
        out_specs=pl.BlockSpec((tile_m, tile_v), lambda v, m: (m, v)),
        compiler_params=_compiler_params(("parallel", "parallel"), est),
    )(x, lnf_w, lnf_b, wte)


def bc_lm_forward(tokens, params, *, n_head, eps, logits_dtype=jnp.float32):
    """BC_LM.forward(tokens, attn_mask) -> (logits, past_key_values).

    With prefix_attn_mask=None, BC_LM passes attn_mask=None to the GPT, so the
    attention mask is purely causal and position ids are arange(T).
    """
    # TODO(synk): prefix_embs / prefix_attn_mask / remove_prefix_position_embs
    # branches (require external prefix tensors) are not implemented.
    B, T = tokens.shape
    C = params["wte"].shape[1]
    hd = C // n_head

    # glue: embedding gather + positional embedding (dropout = 0, eval mode);
    # residual stream carried in bf16 between kernels (f32 math inside each kernel).
    x = (params["wte"][tokens].astype(jnp.float32)
         + params["wpe"][:T].astype(jnp.float32)[None, :, :]).astype(jnp.bfloat16)
    x = x.reshape(B * T, C)

    past_key_values = []
    for blk in params["blocks"]:
        q, k, v = run_qkv(x, blk, eps=eps)
        x = run_attention(x.reshape(B, T, C),
                          q.reshape(B, T, C), k.reshape(B, T, C), v.reshape(B, T, C),
                          blk, n_head=n_head).reshape(B * T, C)
        x = run_mlp(x, blk, eps=eps)
        # expose (B, n_head, T, hd) like the torch model; kept bf16 (half HBM traffic).
        # TODO(synk): emit K/V head-major inside the QKV kernel when hd >= 128 to
        # avoid this external transpose pass (kept C-on-lanes here: hd < 128).
        past_key_values.append(
            (k.reshape(B, T, n_head, hd).transpose(0, 2, 1, 3),
             v.reshape(B, T, n_head, hd).transpose(0, 2, 1, 3)))

    logits = run_lm_head(x, params["lnf_w"], params["lnf_b"], params["wte"],
                         eps=eps, logits_dtype=logits_dtype)
    return logits.reshape(B, T, -1), tuple(past_key_values)


# ---------------------------------------------------------------------------
# Deterministic parameter construction (bf16 matmul weights, f32 LN/bias).
# The 1/sqrt(head_dim) attention scale is folded into the Q columns of w_qkv/b_qkv.
# ---------------------------------------------------------------------------
def init_params(key, *, vocab_size, n_embd, n_head, n_layer, dim_ff, block_size):
    hd = n_embd // n_head
    q_scale = 1.0 / math.sqrt(hd)
    keys = jax.random.split(key, 2 + 4 * n_layer)
    kidx = 0

    def nrm_f32(k, shape):
        return jax.random.normal(k, shape, jnp.float32) * 0.02

    wte = nrm_f32(keys[kidx], (vocab_size, n_embd)).astype(jnp.bfloat16); kidx += 1
    wpe = nrm_f32(keys[kidx], (block_size, n_embd)).astype(jnp.bfloat16); kidx += 1

    blocks = []
    for _ in range(n_layer):
        w_qkv = nrm_f32(keys[kidx], (n_embd, 3 * n_embd))
        w_qkv = w_qkv.at[:, :n_embd].multiply(q_scale)            # fold attention scale
        b_qkv = jnp.zeros((1, 3 * n_embd), jnp.float32)
        b_qkv = b_qkv.at[:, :n_embd].multiply(q_scale)
        blk = {
            "ln1_w": jnp.ones((1, n_embd), jnp.float32),
            "ln1_b": jnp.zeros((1, n_embd), jnp.float32),
            "w_qkv": w_qkv.astype(jnp.bfloat16),
            "b_qkv": b_qkv,
            "w_proj": nrm_f32(keys[kidx + 1], (n_embd, n_embd)).astype(jnp.bfloat16),
            "b_proj": jnp.zeros((1, n_embd), jnp.float32),
            "ln2_w": jnp.ones((1, n_embd), jnp.float32),
            "ln2_b": jnp.zeros((1, n_embd), jnp.float32),
            "w_fc": nrm_f32(keys[kidx + 2], (n_embd, dim_ff)).astype(jnp.bfloat16),
            "b_fc": jnp.zeros((1, dim_ff), jnp.float32),
            "w_out": nrm_f32(keys[kidx + 3], (dim_ff, n_embd)).astype(jnp.bfloat16),
            "b_out": jnp.zeros((1, n_embd), jnp.float32),
        }
        kidx += 4
        blocks.append(blk)

    return {
        "wte": wte,          # (V, C) bf16; also the tied lm_head weight (no wte.T copy)
        "wpe": wpe,
        "blocks": blocks,
        "lnf_w": jnp.ones((1, n_embd), jnp.float32),
        "lnf_b": jnp.zeros((1, n_embd), jnp.float32),
    }


# ---------------------------------------------------------------------------
if __name__ == "__main__":
    # small net_config consistent with BC_LM / EvolvableGPT
    B, T = 2, 8
    vocab_size, n_embd, n_head, n_layer = 128, 32, 2, 2
    dim_ff, block_size, eps = 64, 16, 1e-5

    key = jax.random.PRNGKey(0)
    pkey, tkey = jax.random.split(key)
    params = init_params(pkey, vocab_size=vocab_size, n_embd=n_embd,
                         n_head=n_head, n_layer=n_layer, dim_ff=dim_ff,
                         block_size=block_size)

    tokens = jax.random.randint(tkey, (B, T), 0, vocab_size, dtype=jnp.int32)

    _vmem_capacity()        # query VMEM capacity once, eagerly
    _single_buffer_ok()     # probe pl.Buffered(1) support once, eagerly

    fwd = jax.jit(functools.partial(bc_lm_forward, n_head=n_head, eps=eps))
    logits, past_kv = fwd(tokens, params)
    jax.block_until_ready(logits)
    jax.block_until_ready(past_kv)

    assert logits.shape == (B, T, vocab_size)
    assert len(past_kv) == n_layer
    assert past_kv[0][0].shape == (B, n_head, T, n_embd // n_head)
    print("KERNEL_OK")
</pallas_src>

<mosaic_0001>
module attributes {stable_mosaic.version = 11 : i64} {
  func.func @_k(%arg0: i32, %arg1: memref<8x128xf32, #tpu.memory_space<vmem>>, %arg2: memref<8x128xf32, #tpu.memory_space<vmem>>) attributes {dimension_semantics = [#tpu.dimension_semantics<arbitrary>], iteration_bounds = array<i64: 2>, scalar_prefetch = 0 : i64, scratch_operands = 0 : i64, tpu.core_type = #tpu.core_type<tc>, window_params = [{pipeline_mode = #tpu.pipeline_mode<synchronous>, transform_indices = @transform_0, window_bounds = array<i64: 8, 128>}, {pipeline_mode = #tpu.pipeline_mode<synchronous>, transform_indices = @transform_1, window_bounds = array<i64: 8, 128>}]} {
    %c0 = arith.constant 0 : index
    %c0_0 = arith.constant 0 : index
    %0 = vector.load %arg1[%c0, %c0_0] : memref<8x128xf32, #tpu.memory_space<vmem>>, vector<8x128xf32>
    %cst = arith.constant 1.000000e+00 : f32
    %1 = vector.broadcast %cst : f32 to vector<8x128xf32>
    %2 = arith.addf %0, %1 : vector<8x128xf32>
    %c0_1 = arith.constant 0 : index
    %c0_2 = arith.constant 0 : index
    %3 = vector.load %arg2[%c0_1, %c0_2] : memref<8x128xf32, #tpu.memory_space<vmem>>, vector<8x128xf32>
    tpu.vector_store %arg2[%c0_1, %c0_2], %2 {strides = array<i32>} : memref<8x128xf32, #tpu.memory_space<vmem>>, vector<8x128xf32>,
    return
  }
  func.func @transform_0(%arg0: i32) -> (i32, i32) {
    %c0_i32 = arith.constant 0 : i32
    %c0_i32_0 = arith.constant 0 : i32
    %c0_i32_1 = arith.constant 0 : i32
    return %c0_i32, %c0_i32_0 : i32, i32
  }
  func.func @transform_1(%arg0: i32) -> (i32, i32) {
    %c0_i32 = arith.constant 0 : i32
    %c0_i32_0 = arith.constant 0 : i32
    %c0_i32_1 = arith.constant 0 : i32
    return %c0_i32, %c0_i32_0 : i32, i32
  }
}

module attributes {stable_mosaic.version = 11 : i64} {
  func.func @qkv_kernel(%arg0: i32, %arg1: memref<16x32xbf16, #tpu.memory_space<vmem>>, %arg2: memref<1x32xf32, #tpu.memory_space<vmem>>, %arg3: memref<1x32xf32, #tpu.memory_space<vmem>>, %arg4: memref<32x96xbf16, #tpu.memory_space<vmem>>, %arg5: memref<1x96xf32, #tpu.memory_space<vmem>>, %arg6: memref<16x32xbf16, #tpu.memory_space<vmem>>, %arg7: memref<16x32xbf16, #tpu.memory_space<vmem>>, %arg8: memref<16x32xbf16, #tpu.memory_space<vmem>>) attributes {dimension_semantics = [#tpu.dimension_semantics<parallel>], iteration_bounds = array<i64: 1>, scalar_prefetch = 0 : i64, scratch_operands = 0 : i64, tpu.core_type = #tpu.core_type<tc>, window_params = [{transform_indices = @transform_0, window_bounds = array<i64: 16, 32>}, {pipeline_mode = #tpu.pipeline_mode<synchronous>, transform_indices = @transform_1, window_bounds = array<i64: 1, 32>}, {pipeline_mode = #tpu.pipeline_mode<synchronous>, transform_indices = @transform_2, window_bounds = array<i64: 1, 32>}, {pipeline_mode = #tpu.pipeline_mode<synchronous>, transform_indices = @transform_3, window_bounds = array<i64: 32, 96>}, {pipeline_mode = #tpu.pipeline_mode<synchronous>, transform_indices = @transform_4, window_bounds = array<i64: 1, 96>}, {transform_indices = @transform_5, window_bounds = array<i64: 16, 32>}, {transform_indices = @transform_6, window_bounds = array<i64: 16, 32>}, {transform_indices = @transform_7, window_bounds = array<i64: 16, 32>}]} {
    %c0 = arith.constant 0 : index
    %c0_0 = arith.constant 0 : index
    %0 = vector.load %arg1[%c0, %c0_0] : memref<16x32xbf16, #tpu.memory_space<vmem>>, vector<16x32xbf16>
    %1 = arith.extf %0 : vector<16x32xbf16> to vector<16x32xf32>
    %c0_1 = arith.constant 0 : index
    %c0_2 = arith.constant 0 : index
    %2 = vector.load %arg2[%c0_1, %c0_2] : memref<1x32xf32, #tpu.memory_space<vmem>>, vector<1x32xf32>
    %3 = vector.shape_cast %2 : vector<1x32xf32> to vector<32xf32>
    %c0_3 = arith.constant 0 : index
    %c0_4 = arith.constant 0 : index
    %4 = vector.load %arg3[%c0_3, %c0_4] : memref<1x32xf32, #tpu.memory_space<vmem>>, vector<1x32xf32>
    %5 = vector.shape_cast %4 : vector<1x32xf32> to vector<32xf32>
    %cst = arith.constant dense<0.000000e+00> : vector<16xf32>
    %6 = vector.multi_reduction <add>, %1, %cst [1] : vector<16x32xf32> to vector<16xf32>
    %7 = vector.shape_cast %6 : vector<16xf32> to vector<16x1xf32>
    %cst_5 = arith.constant 3.200000e+01 : f32
    %8 = vector.broadcast %cst_5 : f32 to vector<16x1xf32>
    %9 = arith.divf %7, %8 : vector<16x1xf32>
    %10 = vector.broadcast %9 : vector<16x1xf32> to vector<16x32xf32>
    %11 = arith.subf %1, %10 : vector<16x32xf32>
    %12 = arith.mulf %11, %11 : vector<16x32xf32>
    %cst_6 = arith.constant dense<0.000000e+00> : vector<16xf32>
    %13 = vector.multi_reduction <add>, %12, %cst_6 [1] : vector<16x32xf32> to vector<16xf32>
    %14 = vector.shape_cast %13 : vector<16xf32> to vector<16x1xf32>
    %cst_7 = arith.constant 3.200000e+01 : f32
    %15 = vector.broadcast %cst_7 : f32 to vector<16x1xf32>
    %16 = arith.divf %14, %15 : vector<16x1xf32>
    %17 = vector.broadcast %9 : vector<16x1xf32> to vector<16x32xf32>
    %18 = arith.subf %1, %17 : vector<16x32xf32>
    %cst_8 = arith.constant 9.99999974E-6 : f32
    %19 = vector.broadcast %cst_8 : f32 to vector<16x1xf32>
    %20 = arith.addf %16, %19 : vector<16x1xf32>
    %21 = math.rsqrt %20 : vector<16x1xf32>
    %22 = vector.broadcast %21 : vector<16x1xf32> to vector<16x32xf32>
    %23 = arith.mulf %18, %22 : vector<16x32xf32>
    %24 = vector.shape_cast %3 : vector<32xf32> to vector<1x32xf32>
    %25 = vector.broadcast %24 : vector<1x32xf32> to vector<16x32xf32>
    %26 = arith.mulf %23, %25 : vector<16x32xf32>
    %27 = vector.shape_cast %5 : vector<32xf32> to vector<1x32xf32>
    %28 = vector.broadcast %27 : vector<1x32xf32> to vector<16x32xf32>
    %29 = arith.addf %26, %28 : vector<16x32xf32>
    %30 = arith.truncf %29 : vector<16x32xf32> to vector<16x32xbf16>
    %c0_9 = arith.constant 0 : index
    %c0_10 = arith.constant 0 : index
    %31 = vector.load %arg4[%c0_9, %c0_10] : memref<32x96xbf16, #tpu.memory_space<vmem>>, vector<32x96xbf16>
    %cst_11 = arith.constant dense<0.000000e+00> : vector<16x96xf32>
    %32 = tpu.matmul %30, %31, %cst_11 {dimension_numbers = #tpu.dot_dimension_numbers<[1], [0], [0], [1], [0, 0, 1, 1], [], []>} : vector<16x32xbf16>, vector<32x96xbf16>, vector<16x96xf32> -> vector<16x96xf32>
    %c0_12 = arith.constant 0 : index
    %c0_13 = arith.constant 0 : index
    %33 = vector.load %arg5[%c0_12, %c0_13] : memref<1x96xf32, #tpu.memory_space<vmem>>, vector<1x96xf32>
    %34 = vector.shape_cast %33 : vector<1x96xf32> to vector<96xf32>
    %35 = vector.shape_cast %34 : vector<96xf32> to vector<1x96xf32>
    %36 = vector.broadcast %35 : vector<1x96xf32> to vector<16x96xf32>
    %37 = arith.addf %32, %36 : vector<16x96xf32>
    %38 = arith.truncf %37 : vector<16x96xf32> to vector<16x96xbf16>
    %39 = vector.extract_strided_slice %38 {offsets = [0, 0], sizes = [16, 32], strides = [1, 1]} : vector<16x96xbf16> to vector<16x32xbf16>
    %c0_14 = arith.constant 0 : index
    %c0_15 = arith.constant 0 : index
    %40 = vector.load %arg6[%c0_14, %c0_15] : memref<16x32xbf16, #tpu.memory_space<vmem>>, vector<16x32xbf16>
    tpu.vector_store %arg6[%c0_14, %c0_15], %39 {strides = array<i32>} : memref<16x32xbf16, #tpu.memory_space<vmem>>, vector<16x32xbf16>,
    %41 = vector.extract_strided_slice %38 {offsets = [0, 32], sizes = [16, 32], strides = [1, 1]} : vector<16x96xbf16> to vector<16x32xbf16>
    %c0_16 = arith.constant 0 : index
    %c0_17 = arith.constant 0 : index
    %42 = vector.load %arg7[%c0_16, %c0_17] : memref<16x32xbf16, #tpu.memory_space<vmem>>, vector<16x32xbf16>
    tpu.vector_store %arg7[%c0_16, %c0_17], %41 {strides = array<i32>} : memref<16x32xbf16, #tpu.memory_space<vmem>>, vector<16x32xbf16>,
    %43 = vector.extract_strided_slice %38 {offsets = [0, 64], sizes = [16, 32], strides = [1, 1]} : vector<16x96xbf16> to vector<16x32xbf16>
    %c0_18 = arith.constant 0 : index
    %c0_19 = arith.constant 0 : index
    %44 = vector.load %arg8[%c0_18, %c0_19] : memref<16x32xbf16, #tpu.memory_space<vmem>>, vector<16x32xbf16>
    tpu.vector_store %arg8[%c0_18, %c0_19], %43 {strides = array<i32>} : memref<16x32xbf16, #tpu.memory_space<vmem>>, vector<16x32xbf16>,
    return
  }
  func.func @transform_0(%arg0: i32) -> (i32, i32) {
    %c0_i32 = arith.constant 0 : i32
    %c0_i32_0 = arith.constant 0 : i32
    return %arg0, %c0_i32 : i32, i32
  }
  func.func @transform_1(%arg0: i32) -> (i32, i32) {
    %c0_i32 = arith.constant 0 : i32
    %c0_i32_0 = arith.constant 0 : i32
    %c0_i32_1 = arith.constant 0 : i32
    return %c0_i32, %c0_i32_0 : i32, i32
  }
  func.func @transform_2(%arg0: i32) -> (i32, i32) {
    %c0_i32 = arith.constant 0 : i32
    %c0_i32_0 = arith.constant 0 : i32
    %c0_i32_1 = arith.constant 0 : i32
    return %c0_i32, %c0_i32_0 : i32, i32
  }
  func.func @transform_3(%arg0: i32) -> (i32, i32) {
    %c0_i32 = arith.constant 0 : i32
    %c0_i32_0 = arith.constant 0 : i32
    %c0_i32_1 = arith.constant 0 : i32
    return %c0_i32, %c0_i32_0 : i32, i32
  }
  func.func @transform_4(%arg0: i32) -> (i32, i32) {
    %c0_i32 = arith.constant 0 : i32
    %c0_i32_0 = arith.constant 0 : i32
    %c0_i32_1 = arith.constant 0 : i32
    return %c0_i32, %c0_i32_0 : i32, i32
  }
  func.func @transform_5(%arg0: i32) -> (i32, i32) {
    %c0_i32 = arith.constant 0 : i32
    %c0_i32_0 = arith.constant 0 : i32
    return %arg0, %c0_i32 : i32, i32
  }
  func.func @transform_6(%arg0: i32) -> (i32, i32) {
    %c0_i32 = arith.constant 0 : i32
    %c0_i32_0 = arith.constant 0 : i32
    return %arg0, %c0_i32 : i32, i32
  }
  func.func @transform_7(%arg0: i32) -> (i32, i32) {
    %c0_i32 = arith.constant 0 : i32
    %c0_i32_0 = arith.constant 0 : i32
    return %arg0, %c0_i32 : i32, i32
  }
}

module attributes {stable_mosaic.version = 11 : i64} {
  func.func @lm_head_kernel(%arg0: i32, %arg1: i32, %arg2: memref<16x32xbf16, #tpu.memory_space<vmem>>, %arg3: memref<1x32xf32, #tpu.memory_space<vmem>>, %arg4: memref<1x32xf32, #tpu.memory_space<vmem>>, %arg5: memref<128x32xbf16, #tpu.memory_space<vmem>>, %arg6: memref<16x128xf32, #tpu.memory_space<vmem>>) attributes {dimension_semantics = [#tpu.dimension_semantics<parallel>, #tpu.dimension_semantics<parallel>], iteration_bounds = array<i64: 1, 1>, scalar_prefetch = 0 : i64, scratch_operands = 0 : i64, tpu.core_type = #tpu.core_type<tc>, window_params = [{transform_indices = @transform_0, window_bounds = array<i64: 16, 32>}, {pipeline_mode = #tpu.pipeline_mode<synchronous>, transform_indices = @transform_1, window_bounds = array<i64: 1, 32>}, {pipeline_mode = #tpu.pipeline_mode<synchronous>, transform_indices = @transform_2, window_bounds = array<i64: 1, 32>}, {transform_indices = @transform_3, window_bounds = array<i64: 128, 32>}, {transform_indices = @transform_4, window_bounds = array<i64: 16, 128>}]} {
    %c0 = arith.constant 0 : index
    %c0_0 = arith.constant 0 : index
    %0 = vector.load %arg2[%c0, %c0_0] : memref<16x32xbf16, #tpu.memory_space<vmem>>, vector<16x32xbf16>
    %1 = arith.extf %0 : vector<16x32xbf16> to vector<16x32xf32>
    %c0_1 = arith.constant 0 : index
    %c0_2 = arith.constant 0 : index
    %2 = vector.load %arg3[%c0_1, %c0_2] : memref<1x32xf32, #tpu.memory_space<vmem>>, vector<1x32xf32>
    %3 = vector.shape_cast %2 : vector<1x32xf32> to vector<32xf32>
    %c0_3 = arith.constant 0 : index
    %c0_4 = arith.constant 0 : index
    %4 = vector.load %arg4[%c0_3, %c0_4] : memref<1x32xf32, #tpu.memory_space<vmem>>, vector<1x32xf32>
    %5 = vector.shape_cast %4 : vector<1x32xf32> to vector<32xf32>
    %cst = arith.constant dense<0.000000e+00> : vector<16xf32>
    %6 = vector.multi_reduction <add>, %1, %cst [1] : vector<16x32xf32> to vector<16xf32>
    %7 = vector.shape_cast %6 : vector<16xf32> to vector<16x1xf32>
    %cst_5 = arith.constant 3.200000e+01 : f32
    %8 = vector.broadcast %cst_5 : f32 to vector<16x1xf32>
    %9 = arith.divf %7, %8 : vector<16x1xf32>
    %10 = vector.broadcast %9 : vector<16x1xf32> to vector<16x32xf32>
    %11 = arith.subf %1, %10 : vector<16x32xf32>
    %12 = arith.mulf %11, %11 : vector<16x32xf32>
    %cst_6 = arith.constant dense<0.000000e+00> : vector<16xf32>
    %13 = vector.multi_reduction <add>, %12, %cst_6 [1] : vector<16x32xf32> to vector<16xf32>
    %14 = vector.shape_cast %13 : vector<16xf32> to vector<16x1xf32>
    %cst_7 = arith.constant 3.200000e+01 : f32
    %15 = vector.broadcast %cst_7 : f32 to vector<16x1xf32>
    %16 = arith.divf %14, %15 : vector<16x1xf32>
    %17 = vector.broadcast %9 : vector<16x1xf32> to vector<16x32xf32>
    %18 = arith.subf %1, %17 : vector<16x32xf32>
    %cst_8 = arith.constant 9.99999974E-6 : f32
    %19 = vector.broadcast %cst_8 : f32 to vector<16x1xf32>
    %20 = arith.addf %16, %19 : vector<16x1xf32>
    %21 = math.rsqrt %20 : vector<16x1xf32>
    %22 = vector.broadcast %21 : vector<16x1xf32> to vector<16x32xf32>
    %23 = arith.mulf %18, %22 : vector<16x32xf32>
    %24 = vector.shape_cast %3 : vector<32xf32> to vector<1x32xf32>
    %25 = vector.broadcast %24 : vector<1x32xf32> to vector<16x32xf32>
    %26 = arith.mulf %23, %25 : vector<16x32xf32>
    %27 = vector.shape_cast %5 : vector<32xf32> to vector<1x32xf32>
    %28 = vector.broadcast %27 : vector<1x32xf32> to vector<16x32xf32>
    %29 = arith.addf %26, %28 : vector<16x32xf32>
    %30 = arith.truncf %29 : vector<16x32xf32> to vector<16x32xbf16>
    %c0_9 = arith.constant 0 : index
    %c0_10 = arith.constant 0 : index
    %31 = vector.load %arg5[%c0_9, %c0_10] : memref<128x32xbf16, #tpu.memory_space<vmem>>, vector<128x32xbf16>
    "tpu.trace_start"() <{level = 10 : i32, message = "mc,vc->mv"}> : () -> ()
    %cst_11 = arith.constant dense<0.000000e+00> : vector<16x128xf32>
    %32 = tpu.matmul %30, %31, %cst_11 {dimension_numbers = #tpu.dot_dimension_numbers<[1], [1], [0], [0], [0, 0, 1, 0], [], []>} : vector<16x32xbf16>, vector<128x32xbf16>, vector<16x128xf32> -> vector<16x128xf32>
    "tpu.trace_stop"() : () -> ()
    %c0_12 = arith.constant 0 : index
    %c0_13 = arith.constant 0 : index
    %33 = vector.load %arg6[%c0_12, %c0_13] : memref<16x128xf32, #tpu.memory_space<vmem>>, vector<16x128xf32>
    tpu.vector_store %arg6[%c0_12, %c0_13], %32 {strides = array<i32>} : memref<16x128xf32, #tpu.memory_space<vmem>>, vector<16x128xf32>,
    return
  }
  func.func @transform_0(%arg0: i32, %arg1: i32) -> (i32, i32) {
    %c0_i32 = arith.constant 0 : i32
    %c0_i32_0 = arith.constant 0 : i32
    return %arg1, %c0_i32 : i32, i32
  }
  func.func @transform_1(%arg0: i32, %arg1: i32) -> (i32, i32) {
    %c0_i32 = arith.constant 0 : i32
    %c0_i32_0 = arith.constant 0 : i32
    %c0_i32_1 = arith.constant 0 : i32
    return %c0_i32, %c0_i32_0 : i32, i32
  }
  func.func @transform_2(%arg0: i32, %arg1: i32) -> (i32, i32) {
    %c0_i32 = arith.constant 0 : i32
    %c0_i32_0 = arith.constant 0 : i32
    %c0_i32_1 = arith.constant 0 : i32
    return %c0_i32, %c0_i32_0 : i32, i32
  }
  func.func @transform_3(%arg0: i32, %arg1: i32) -> (i32, i32) {
    %c0_i32 = arith.constant 0 : i32
    %c0_i32_0 = arith.constant 0 : i32
    return %arg0, %c0_i32 : i32, i32
  }
  func.func @transform_4(%arg0: i32, %arg1: i32) -> (i32, i32) {
    %c0_i32 = arith.constant 0 : i32
    return %arg1, %arg0 : i32, i32
  }
}

module attributes {stable_mosaic.version = 11 : i64} {
  func.func @attn_core_kernel(%arg0: i32, %arg1: i32, %arg2: i32, %arg3: memref<1x8x32xbf16, #tpu.memory_space<vmem>>, %arg4: memref<1x8x32xbf16, #tpu.memory_space<vmem>>, %arg5: memref<1x8x32xbf16, #tpu.memory_space<vmem>>, %arg6: memref<1x8x32xbf16, #tpu.memory_space<vmem>>, %arg7: memref<32x32xbf16, #tpu.memory_space<vmem>>, %arg8: memref<1x32xf32, #tpu.memory_space<vmem>>, %arg9: memref<1x8x32xbf16, #tpu.memory_space<vmem>>, %arg10: memref<2x8x16xbf16, #tpu.memory_space<vmem>>, %arg11: memref<2x8x1xf32, #tpu.memory_space<vmem>>, %arg12: memref<2x8x1xf32, #tpu.memory_space<vmem>>, %arg13: memref<2x8x16xf32, #tpu.memory_space<vmem>>) attributes {dimension_semantics = [#tpu.dimension_semantics<parallel>, #tpu.dimension_semantics<parallel>, #tpu.dimension_semantics<arbitrary>], iteration_bounds = array<i64: 2, 1, 1>, scalar_prefetch = 0 : i64, scratch_operands = 4 : i64, tpu.core_type = #tpu.core_type<tc>, window_params = [{transform_indices = @transform_0, window_bounds = array<i64: 1, 8, 32>}, {transform_indices = @transform_1, window_bounds = array<i64: 1, 8, 32>}, {transform_indices = @transform_2, window_bounds = array<i64: 1, 8, 32>}, {transform_indices = @transform_3, window_bounds = array<i64: 1, 8, 32>}, {pipeline_mode = #tpu.pipeline_mode<synchronous>, transform_indices = @transform_4, window_bounds = array<i64: 32, 32>}, {pipeline_mode = #tpu.pipeline_mode<synchronous>, transform_indices = @transform_5, window_bounds = array<i64: 1, 32>}, {transform_indices = @transform_6, window_bounds = array<i64: 1, 8, 32>}]} {
    %c0_i32 = arith.constant 0 : i32
    %0 = arith.cmpi eq, %arg2, %c0_i32 : i32
    %1 = arith.extui %0 : i1 to i32
    %c0_i32_0 = arith.constant 0 : i32
    %2 = arith.cmpi ne, %1, %c0_i32_0 : i32
    scf.if %2 {
      %c0 = arith.constant 0 : index
      %c0_5 = arith.constant 0 : index
      %c0_6 = arith.constant 0 : index
      %12 = vector.load %arg4[%c0, %c0_5, %c0_6] : memref<1x8x32xbf16, #tpu.memory_space<vmem>>, vector<1x8x32xbf16>
      %13 = vector.shape_cast %12 : vector<1x8x32xbf16> to vector<8x32xbf16>
      %14 = vector.shape_cast %13 : vector<8x32xbf16> to vector<8x2x16xbf16>
      %15 = tpu.transpose %14, [1, 0, 2] : vector<8x2x16xbf16> -> vector<2x8x16xbf16>
      %c0_7 = arith.constant 0 : index
      %c0_8 = arith.constant 0 : index
      %c0_9 = arith.constant 0 : index
      %16 = vector.load %arg10[%c0_7, %c0_8, %c0_9] : memref<2x8x16xbf16, #tpu.memory_space<vmem>>, vector<2x8x16xbf16>
      tpu.vector_store %arg10[%c0_7, %c0_8, %c0_9], %15 {strides = array<i32>} : memref<2x8x16xbf16, #tpu.memory_space<vmem>>, vector<2x8x16xbf16>,
      %cst = arith.constant 0xFF800000 : f32
      %17 = vector.broadcast %cst : f32 to vector<2x8x1xf32>
      %c0_10 = arith.constant 0 : index
      %c0_11 = arith.constant 0 : index
      %c0_12 = arith.constant 0 : index
      %18 = vector.load %arg11[%c0_10, %c0_11, %c0_12] : memref<2x8x1xf32, #tpu.memory_space<vmem>>, vector<2x8x1xf32>
      tpu.vector_store %arg11[%c0_10, %c0_11, %c0_12], %17 {strides = array<i32>} : memref<2x8x1xf32, #tpu.memory_space<vmem>>, vector<2x8x1xf32>,
      %cst_13 = arith.constant 0.000000e+00 : f32
      %19 = vector.broadcast %cst_13 : f32 to vector<2x8x1xf32>
      %c0_14 = arith.constant 0 : index
      %c0_15 = arith.constant 0 : index
      %c0_16 = arith.constant 0 : index
      %20 = vector.load %arg12[%c0_14, %c0_15, %c0_16] : memref<2x8x1xf32, #tpu.memory_space<vmem>>, vector<2x8x1xf32>
      tpu.vector_store %arg12[%c0_14, %c0_15, %c0_16], %19 {strides = array<i32>} : memref<2x8x1xf32, #tpu.memory_space<vmem>>, vector<2x8x1xf32>,
      %cst_17 = arith.constant 0.000000e+00 : f32
      %21 = vector.broadcast %cst_17 : f32 to vector<2x8x16xf32>
      %c0_18 = arith.constant 0 : index
      %c0_19 = arith.constant 0 : index
      %c0_20 = arith.constant 0 : index
      %22 = vector.load %arg13[%c0_18, %c0_19, %c0_20] : memref<2x8x16xf32, #tpu.memory_space<vmem>>, vector<2x8x16xf32>
      tpu.vector_store %arg13[%c0_18, %c0_19, %c0_20], %21 {strides = array<i32>} : memref<2x8x16xf32, #tpu.memory_space<vmem>>, vector<2x8x16xf32>,
    } else {
    }
    %c8_i32 = arith.constant 8 : i32
    %3 = arith.muli %arg2, %c8_i32 : i32
    %c1_i32 = arith.constant 1 : i32
    %4 = arith.addi %arg1, %c1_i32 : i32
    %c8_i32_1 = arith.constant 8 : i32
    %5 = arith.muli %4, %c8_i32_1 : i32
    %6 = arith.cmpi slt, %3, %5 : i32
    %7 = arith.extui %6 : i1 to i32
    %c0_i32_2 = arith.constant 0 : i32
    %8 = arith.cmpi ne, %7, %c0_i32_2 : i32
    scf.if %8 {
      %c0 = arith.constant 0 : index
      %c0_5 = arith.constant 0 : index
      %c0_6 = arith.constant 0 : index
      %12 = vector.load %arg5[%c0, %c0_5, %c0_6] : memref<1x8x32xbf16, #tpu.memory_space<vmem>>, vector<1x8x32xbf16>
      %13 = vector.shape_cast %12 : vector<1x8x32xbf16> to vector<8x32xbf16>
      %14 = vector.shape_cast %13 : vector<8x32xbf16> to vector<8x2x16xbf16>
      %15 = tpu.transpose %14, [1, 0, 2] : vector<8x2x16xbf16> -> vector<2x8x16xbf16>
      %c0_7 = arith.constant 0 : index
      %c0_8 = arith.constant 0 : index
      %c0_9 = arith.constant 0 : index
      %16 = vector.load %arg6[%c0_7, %c0_8, %c0_9] : memref<1x8x32xbf16, #tpu.memory_space<vmem>>, vector<1x8x32xbf16>
      %17 = vector.shape_cast %16 : vector<1x8x32xbf16> to vector<8x32xbf16>
      %18 = vector.shape_cast %17 : vector<8x32xbf16> to vector<8x2x16xbf16>
      %19 = tpu.transpose %18, [1, 0, 2] : vector<8x2x16xbf16> -> vector<2x8x16xbf16>
      %c0_10 = arith.constant 0 : index
      %c0_11 = arith.constant 0 : index
      %c0_12 = arith.constant 0 : index
      %20 = vector.load %arg10[%c0_10, %c0_11, %c0_12] : memref<2x8x16xbf16, #tpu.memory_space<vmem>>, vector<2x8x16xbf16>
      "tpu.trace_start"() <{level = 10 : i32, message = "hqd,hkd->hqk"}> : () -> ()
      %cst = arith.constant dense<0.000000e+00> : vector<2x8x8xf32>
      %21 = tpu.matmul %20, %15, %cst {dimension_numbers = #tpu.dot_dimension_numbers<[2], [2], [1], [1], [0, 0, 0, 1, 1, 1], [0], [0]>} : vector<2x8x16xbf16>, vector<2x8x16xbf16>, vector<2x8x8xf32> -> vector<2x8x8xf32>
      "tpu.trace_stop"() : () -> ()
      %c8_i32_13 = arith.constant 8 : i32
      %22 = arith.muli %arg1, %c8_i32_13 : i32
      %23 = tpu.iota {dimensions = array<i32: 0>} : vector<8x8xi32>
      %24 = vector.broadcast %22 : i32 to vector<8x8xi32>
      %25 = arith.addi %24, %23 : vector<8x8xi32>
      %c8_i32_14 = arith.constant 8 : i32
      %26 = arith.muli %arg2, %c8_i32_14 : i32
      %27 = tpu.iota {dimensions = array<i32: 1>} : vector<8x8xi32>
      %28 = vector.broadcast %26 : i32 to vector<8x8xi32>
      %29 = arith.addi %28, %27 : vector<8x8xi32>
      %30 = arith.cmpi sge, %25, %29 : vector<8x8xi32>
      %31 = vector.shape_cast %30 : vector<8x8xi1> to vector<1x8x8xi1>
      %cst_15 = arith.constant -1.000000e+30 : f32
      %32 = vector.shape_cast %31 : vector<1x8x8xi1> to vector<1x8x8xi1>
      %33 = vector.broadcast %32 : vector<1x8x8xi1> to vector<2x8x8xi1>
      %34 = vector.broadcast %cst_15 : f32 to vector<2x8x8xf32>
      %35 = arith.select %33, %21, %34 : vector<2x8x8xi1>, vector<2x8x8xf32>
      %c0_16 = arith.constant 0 : index
      %c0_17 = arith.constant 0 : index
      %c0_18 = arith.constant 0 : index
      %36 = vector.load %arg11[%c0_16, %c0_17, %c0_18] : memref<2x8x1xf32, #tpu.memory_space<vmem>>, vector<2x8x1xf32>
      %cst_19 = arith.constant dense<0xFF800000> : vector<2x8xf32>
      %37 = vector.multi_reduction <maximumf>, %35, %cst_19 [2] : vector<2x8x8xf32> to vector<2x8xf32>
      %38 = vector.shape_cast %37 : vector<2x8xf32> to vector<2x8x1xf32>
      %39 = arith.maximumf %36, %38 : vector<2x8x1xf32>
      %40 = arith.subf %36, %39 : vector<2x8x1xf32>
      %41 = math.exp %40 : vector<2x8x1xf32>
      %42 = vector.broadcast %39 : vector<2x8x1xf32> to vector<2x8x8xf32>
      %43 = arith.subf %35, %42 : vector<2x8x8xf32>
      %44 = math.exp %43 : vector<2x8x8xf32>
      %c0_20 = arith.constant 0 : index
      %c0_21 = arith.constant 0 : index
      %c0_22 = arith.constant 0 : index
      %45 = vector.load %arg12[%c0_20, %c0_21, %c0_22] : memref<2x8x1xf32, #tpu.memory_space<vmem>>, vector<2x8x1xf32>
      %46 = arith.mulf %41, %45 : vector<2x8x1xf32>
      %cst_23 = arith.constant dense<0.000000e+00> : vector<2x8xf32>
      %47 = vector.multi_reduction <add>, %44, %cst_23 [2] : vector<2x8x8xf32> to vector<2x8xf32>
      %48 = vector.shape_cast %47 : vector<2x8xf32> to vector<2x8x1xf32>
      %49 = arith.addf %46, %48 : vector<2x8x1xf32>
      %c0_24 = arith.constant 0 : index
      %c0_25 = arith.constant 0 : index
      %c0_26 = arith.constant 0 : index
      %50 = vector.load %arg12[%c0_24, %c0_25, %c0_26] : memref<2x8x1xf32, #tpu.memory_space<vmem>>, vector<2x8x1xf32>
      tpu.vector_store %arg12[%c0_24, %c0_25, %c0_26], %49 {strides = array<i32>} : memref<2x8x1xf32, #tpu.memory_space<vmem>>, vector<2x8x1xf32>,
      %c0_27 = arith.constant 0 : index
      %c0_28 = arith.constant 0 : index
      %c0_29 = arith.constant 0 : index
      %51 = vector.load %arg13[%c0_27, %c0_28, %c0_29] : memref<2x8x16xf32, #tpu.memory_space<vmem>>, vector<2x8x16xf32>
      %52 = vector.broadcast %41 : vector<2x8x1xf32> to vector<2x8x16xf32>
      %53 = arith.mulf %52, %51 : vector<2x8x16xf32>
      %54 = arith.truncf %44 : vector<2x8x8xf32> to vector<2x8x8xbf16>
      "tpu.trace_start"() <{level = 10 : i32, message = "hqk,hkd->hqd"}> : () -> ()
      %cst_30 = arith.constant dense<0.000000e+00> : vector<2x8x16xf32>
      %55 = tpu.matmul %54, %19, %cst_30 {dimension_numbers = #tpu.dot_dimension_numbers<[2], [1], [1], [2], [0, 0, 0, 1, 1, 2], [0], [0]>} : vector<2x8x8xbf16>, vector<2x8x16xbf16>, vector<2x8x16xf32> -> vector<2x8x16xf32>
      "tpu.trace_stop"() : () -> ()
      %56 = arith.addf %53, %55 : vector<2x8x16xf32>
      %c0_31 = arith.constant 0 : index
      %c0_32 = arith.constant 0 : index
      %c0_33 = arith.constant 0 : index
      %57 = vector.load %arg13[%c0_31, %c0_32, %c0_33] : memref<2x8x16xf32, #tpu.memory_space<vmem>>, vector<2x8x16xf32>
      tpu.vector_store %arg13[%c0_31, %c0_32, %c0_33], %56 {strides = array<i32>} : memref<2x8x16xf32, #tpu.memory_space<vmem>>, vector<2x8x16xf32>,
      %c0_34 = arith.constant 0 : index
      %c0_35 = arith.constant 0 : index
      %c0_36 = arith.constant 0 : index
      %58 = vector.load %arg11[%c0_34, %c0_35, %c0_36] : memref<2x8x1xf32, #tpu.memory_space<vmem>>, vector<2x8x1xf32>
      tpu.vector_store %arg11[%c0_34, %c0_35, %c0_36], %39 {strides = array<i32>} : memref<2x8x1xf32, #tpu.memory_space<vmem>>, vector<2x8x1xf32>,
    } else {
    }
    %c0_i32_3 = arith.constant 0 : i32
    %9 = arith.cmpi eq, %arg2, %c0_i32_3 : i32
    %10 = arith.extui %9 : i1 to i32
    %c0_i32_4 = arith.constant 0 : i32
    %11 = arith.cmpi ne, %10, %c0_i32_4 : i32
    scf.if %11 {
      %c0 = arith.constant 0 : index
      %c0_5 = arith.constant 0 : index
      %c0_6 = arith.constant 0 : index
      %12 = vector.load %arg13[%c0, %c0_5, %c0_6] : memref<2x8x16xf32, #tpu.memory_space<vmem>>, vector<2x8x16xf32>
      %c0_7 = arith.constant 0 : index
      %c0_8 = arith.constant 0 : index
      %c0_9 = arith.constant 0 : index
      %13 = vector.load %arg12[%c0_7, %c0_8, %c0_9] : memref<2x8x1xf32, #tpu.memory_space<vmem>>, vector<2x8x1xf32>
      %14 = tpu.reciprocal %13 : vector<2x8x1xf32> -> vector<2x8x1xf32>
      %15 = vector.broadcast %14 : vector<2x8x1xf32> to vector<2x8x16xf32>
      %16 = arith.mulf %12, %15 : vector<2x8x16xf32>
      %17 = tpu.transpose %16, [1, 0, 2] : vector<2x8x16xf32> -> vector<8x2x16xf32>
      %18 = vector.shape_cast %17 : vector<8x2x16xf32> to vector<8x32xf32>
      %c0_10 = arith.constant 0 : index
      %c0_11 = arith.constant 0 : index
      %c0_12 = arith.constant 0 : index
      %19 = vector.load %arg3[%c0_10, %c0_11, %c0_12] : memref<1x8x32xbf16, #tpu.memory_space<vmem>>, vector<1x8x32xbf16>
      %20 = vector.shape_cast %19 : vector<1x8x32xbf16> to vector<8x32xbf16>
      %21 = arith.extf %20 : vector<8x32xbf16> to vector<8x32xf32>
      %22 = arith.truncf %18 : vector<8x32xf32> to vector<8x32xbf16>
      %c0_13 = arith.constant 0 : index
      %c0_14 = arith.constant 0 : index
      %23 = vector.load %arg7[%c0_13, %c0_14] : memref<32x32xbf16, #tpu.memory_space<vmem>>, vector<32x32xbf16>
      %cst = arith.constant dense<0.000000e+00> : vector<8x32xf32>
      %24 = tpu.matmul %22, %23, %cst {dimension_numbers = #tpu.dot_dimension_numbers<[1], [0], [0], [1], [0, 0, 1, 1], [], []>} : vector<8x32xbf16>, vector<32x32xbf16>, vector<8x32xf32> -> vector<8x32xf32>
      %25 = arith.addf %21, %24 : vector<8x32xf32>
      %c0_15 = arith.constant 0 : index
      %c0_16 = arith.constant 0 : index
      %26 = vector.load %arg8[%c0_15, %c0_16] : memref<1x32xf32, #tpu.memory_space<vmem>>, vector<1x32xf32>
      %27 = vector.shape_cast %26 : vector<1x32xf32> to vector<32xf32>
      %28 = vector.shape_cast %27 : vector<32xf32> to vector<1x32xf32>
      %29 = vector.broadcast %28 : vector<1x32xf32> to vector<8x32xf32>
      %30 = arith.addf %25, %29 : vector<8x32xf32>
      %31 = arith.truncf %30 : vector<8x32xf32> to vector<8x32xbf16>
      %c0_17 = arith.constant 0 : index
      %c0_18 = arith.constant 0 : index
      %c0_19 = arith.constant 0 : index
      %32 = vector.load %arg9[%c0_17, %c0_18, %c0_19] : memref<1x8x32xbf16, #tpu.memory_space<vmem>>, vector<1x8x32xbf16>
      %33 = vector.shape_cast %32 : vector<1x8x32xbf16> to vector<8x32xbf16>
      %34 = vector.shape_cast %31 : vector<8x32xbf16> to vector<1x8x32xbf16>
      tpu.vector_store %arg9[%c0_17, %c0_18, %c0_19], %34 {strides = array<i32>} : memref<1x8x32xbf16, #tpu.memory_space<vmem>>, vector<1x8x32xbf16>,
    } else {
    }
    return
  }
  func.func @transform_0(%arg0: i32, %arg1: i32, %arg2: i32) -> (i32, i32, i32) {
    %c0_i32 = arith.constant 0 : i32
    %c0_i32_0 = arith.constant 0 : i32
    return %arg0, %arg1, %c0_i32 : i32, i32, i32
  }
  func.func @transform_1(%arg0: i32, %arg1: i32, %arg2: i32) -> (i32, i32, i32) {
    %c0_i32 = arith.constant 0 : i32
    %c0_i32_0 = arith.constant 0 : i32
    return %arg0, %arg1, %c0_i32 : i32, i32, i32
  }
  func.func @transform_2(%arg0: i32, %arg1: i32, %arg2: i32) -> (i32, i32, i32) {
    %c0_i32 = arith.constant 0 : i32
    %c0_i32_0 = arith.constant 0 : i32
    return %arg0, %arg2, %c0_i32 : i32, i32, i32
  }
  func.func @transform_3(%arg0: i32, %arg1: i32, %arg2: i32) -> (i32, i32, i32) {
    %c0_i32 = arith.constant 0 : i32
    %c0_i32_0 = arith.constant 0 : i32
    return %arg0, %arg2, %c0_i32 : i32, i32, i32
  }
  func.func @transform_4(%arg0: i32, %arg1: i32, %arg2: i32) -> (i32, i32) {
    %c0_i32 = arith.constant 0 : i32
    %c0_i32_0 = arith.constant 0 : i32
    %c0_i32_1 = arith.constant 0 : i32
    return %c0_i32, %c0_i32_0 : i32, i32
  }
  func.func @transform_5(%arg0: i32, %arg1: i32, %arg2: i32) -> (i32, i32) {
    %c0_i32 = arith.constant 0 : i32
    %c0_i32_0 = arith.constant 0 : i32
    %c0_i32_1 = arith.constant 0 : i32
    return %c0_i32, %c0_i32_0 : i32, i32
  }
  func.func @transform_6(%arg0: i32, %arg1: i32, %arg2: i32) -> (i32, i32, i32) {
    %c0_i32 = arith.constant 0 : i32
    %c0_i32_0 = arith.constant 0 : i32
    return %arg0, %arg1, %c0_i32 : i32, i32, i32
  }
}

module attributes {stable_mosaic.version = 11 : i64} {
  func.func @mlp_kernel(%arg0: i32, %arg1: i32, %arg2: memref<16x32xbf16, #tpu.memory_space<vmem>>, %arg3: memref<1x32xf32, #tpu.memory_space<vmem>>, %arg4: memref<1x32xf32, #tpu.memory_space<vmem>>, %arg5: memref<32x64xbf16, #tpu.memory_space<vmem>>, %arg6: memref<1x64xf32, #tpu.memory_space<vmem>>, %arg7: memref<64x32xbf16, #tpu.memory_space<vmem>>, %arg8: memref<1x32xf32, #tpu.memory_space<vmem>>, %arg9: memref<16x32xbf16, #tpu.memory_space<vmem>>, %arg10: memref<16x32xbf16, #tpu.memory_space<vmem>>, %arg11: memref<16x32xf32, #tpu.memory_space<vmem>>) attributes {dimension_semantics = [#tpu.dimension_semantics<parallel>, #tpu.dimension_semantics<arbitrary>], iteration_bounds = array<i64: 1, 1>, scalar_prefetch = 0 : i64, scratch_operands = 2 : i64, tpu.core_type = #tpu.core_type<tc>, window_params = [{transform_indices = @transform_0, window_bounds = array<i64: 16, 32>}, {pipeline_mode = #tpu.pipeline_mode<synchronous>, transform_indices = @transform_1, window_bounds = array<i64: 1, 32>}, {pipeline_mode = #tpu.pipeline_mode<synchronous>, transform_indices = @transform_2, window_bounds = array<i64: 1, 32>}, {transform_indices = @transform_3, window_bounds = array<i64: 32, 64>}, {transform_indices = @transform_4, window_bounds = array<i64: 1, 64>}, {transform_indices = @transform_5, window_bounds = array<i64: 64, 32>}, {pipeline_mode = #tpu.pipeline_mode<synchronous>, transform_indices = @transform_6, window_bounds = array<i64: 1, 32>}, {transform_indices = @transform_7, window_bounds = array<i64: 16, 32>}]} {
    %c0_i32 = arith.constant 0 : i32
    %0 = arith.cmpi eq, %arg1, %c0_i32 : i32
    %1 = arith.extui %0 : i1 to i32
    %c0_i32_0 = arith.constant 0 : i32
    %2 = arith.cmpi ne, %1, %c0_i32_0 : i32
    scf.if %2 {
      %c0_19 = arith.constant 0 : index
      %c0_20 = arith.constant 0 : index
      %33 = vector.load %arg2[%c0_19, %c0_20] : memref<16x32xbf16, #tpu.memory_space<vmem>>, vector<16x32xbf16>
      %34 = arith.extf %33 : vector<16x32xbf16> to vector<16x32xf32>
      %c0_21 = arith.constant 0 : index
      %c0_22 = arith.constant 0 : index
      %35 = vector.load %arg3[%c0_21, %c0_22] : memref<1x32xf32, #tpu.memory_space<vmem>>, vector<1x32xf32>
      %36 = vector.shape_cast %35 : vector<1x32xf32> to vector<32xf32>
      %c0_23 = arith.constant 0 : index
      %c0_24 = arith.constant 0 : index
      %37 = vector.load %arg4[%c0_23, %c0_24] : memref<1x32xf32, #tpu.memory_space<vmem>>, vector<1x32xf32>
      %38 = vector.shape_cast %37 : vector<1x32xf32> to vector<32xf32>
      %cst_25 = arith.constant dense<0.000000e+00> : vector<16xf32>
      %39 = vector.multi_reduction <add>, %34, %cst_25 [1] : vector<16x32xf32> to vector<16xf32>
      %40 = vector.shape_cast %39 : vector<16xf32> to vector<16x1xf32>
      %cst_26 = arith.constant 3.200000e+01 : f32
      %41 = vector.broadcast %cst_26 : f32 to vector<16x1xf32>
      %42 = arith.divf %40, %41 : vector<16x1xf32>
      %43 = vector.broadcast %42 : vector<16x1xf32> to vector<16x32xf32>
      %44 = arith.subf %34, %43 : vector<16x32xf32>
      %45 = arith.mulf %44, %44 : vector<16x32xf32>
      %cst_27 = arith.constant dense<0.000000e+00> : vector<16xf32>
      %46 = vector.multi_reduction <add>, %45, %cst_27 [1] : vector<16x32xf32> to vector<16xf32>
      %47 = vector.shape_cast %46 : vector<16xf32> to vector<16x1xf32>
      %cst_28 = arith.constant 3.200000e+01 : f32
      %48 = vector.broadcast %cst_28 : f32 to vector<16x1xf32>
      %49 = arith.divf %47, %48 : vector<16x1xf32>
      %50 = vector.broadcast %42 : vector<16x1xf32> to vector<16x32xf32>
      %51 = arith.subf %34, %50 : vector<16x32xf32>
      %cst_29 = arith.constant 9.99999974E-6 : f32
      %52 = vector.broadcast %cst_29 : f32 to vector<16x1xf32>
      %53 = arith.addf %49, %52 : vector<16x1xf32>
      %54 = math.rsqrt %53 : vector<16x1xf32>
      %55 = vector.broadcast %54 : vector<16x1xf32> to vector<16x32xf32>
      %56 = arith.mulf %51, %55 : vector<16x32xf32>
      %57 = vector.shape_cast %36 : vector<32xf32> to vector<1x32xf32>
      %58 = vector.broadcast %57 : vector<1x32xf32> to vector<16x32xf32>
      %59 = arith.mulf %56, %58 : vector<16x32xf32>
      %60 = vector.shape_cast %38 : vector<32xf32> to vector<1x32xf32>
      %61 = vector.broadcast %60 : vector<1x32xf32> to vector<16x32xf32>
      %62 = arith.addf %59, %61 : vector<16x32xf32>
      %63 = arith.truncf %62 : vector<16x32xf32> to vector<16x32xbf16>
      %c0_30 = arith.constant 0 : index
      %c0_31 = arith.constant 0 : index
      %64 = vector.load %arg10[%c0_30, %c0_31] : memref<16x32xbf16, #tpu.memory_space<vmem>>, vector<16x32xbf16>
      tpu.vector_store %arg10[%c0_30, %c0_31], %63 {strides = array<i32>} : memref<16x32xbf16, #tpu.memory_space<vmem>>, vector<16x32xbf16>,
      %cst_32 = arith.constant 0.000000e+00 : f32
      %65 = vector.broadcast %cst_32 : f32 to vector<16x32xf32>
      %c0_33 = arith.constant 0 : index
      %c0_34 = arith.constant 0 : index
      %66 = vector.load %arg11[%c0_33, %c0_34] : memref<16x32xf32, #tpu.memory_space<vmem>>, vector<16x32xf32>
      tpu.vector_store %arg11[%c0_33, %c0_34], %65 {strides = array<i32>} : memref<16x32xf32, #tpu.memory_space<vmem>>, vector<16x32xf32>,
    } else {
    }
    %c0 = arith.constant 0 : index
    %c0_1 = arith.constant 0 : index
    %3 = vector.load %arg10[%c0, %c0_1] : memref<16x32xbf16, #tpu.memory_space<vmem>>, vector<16x32xbf16>
    %c0_2 = arith.constant 0 : index
    %c0_3 = arith.constant 0 : index
    %4 = vector.load %arg5[%c0_2, %c0_3] : memref<32x64xbf16, #tpu.memory_space<vmem>>, vector<32x64xbf16>
    %cst = arith.constant dense<0.000000e+00> : vector<16x64xf32>
    %5 = tpu.matmul %3, %4, %cst {dimension_numbers = #tpu.dot_dimension_numbers<[1], [0], [0], [1], [0, 0, 1, 1], [], []>} : vector<16x32xbf16>, vector<32x64xbf16>, vector<16x64xf32> -> vector<16x64xf32>
    %c0_4 = arith.constant 0 : index
    %c0_5 = arith.constant 0 : index
    %6 = vector.load %arg6[%c0_4, %c0_5] : memref<1x64xf32, #tpu.memory_space<vmem>>, vector<1x64xf32>
    %7 = vector.shape_cast %6 : vector<1x64xf32> to vector<64xf32>
    %8 = vector.shape_cast %7 : vector<64xf32> to vector<1x64xf32>
    %9 = vector.broadcast %8 : vector<1x64xf32> to vector<16x64xf32>
    %10 = arith.addf %5, %9 : vector<16x64xf32>
    %cst_6 = arith.constant 5.000000e-01 : f32
    %11 = vector.broadcast %cst_6 : f32 to vector<16x64xf32>
    %12 = arith.mulf %11, %10 : vector<16x64xf32>
    %cst_7 = arith.constant 4.471500e-02 : f32
    %13 = vector.broadcast %cst_7 : f32 to vector<16x64xf32>
    %14 = arith.mulf %13, %10 : vector<16x64xf32>
    %15 = arith.mulf %14, %10 : vector<16x64xf32>
    %16 = arith.mulf %15, %10 : vector<16x64xf32>
    %17 = arith.addf %10, %16 : vector<16x64xf32>
    %cst_8 = arith.constant 0.797884583 : f32
    %18 = vector.broadcast %cst_8 : f32 to vector<16x64xf32>
    %19 = arith.mulf %18, %17 : vector<16x64xf32>
    %20 = math.tanh %19 : vector<16x64xf32>
    %cst_9 = arith.constant 1.000000e+00 : f32
    %21 = vector.broadcast %cst_9 : f32 to vector<16x64xf32>
    %22 = arith.addf %21, %20 : vector<16x64xf32>
    %23 = arith.mulf %12, %22 : vector<16x64xf32>
    %c0_10 = arith.constant 0 : index
    %c0_11 = arith.constant 0 : index
    %24 = vector.load %arg11[%c0_10, %c0_11] : memref<16x32xf32, #tpu.memory_space<vmem>>, vector<16x32xf32>
    %25 = arith.truncf %23 : vector<16x64xf32> to vector<16x64xbf16>
    %c0_12 = arith.constant 0 : index
    %c0_13 = arith.constant 0 : index
    %26 = vector.load %arg7[%c0_12, %c0_13] : memref<64x32xbf16, #tpu.memory_space<vmem>>, vector<64x32xbf16>
    %cst_14 = arith.constant dense<0.000000e+00> : vector<16x32xf32>
    %27 = tpu.matmul %25, %26, %cst_14 {dimension_numbers = #tpu.dot_dimension_numbers<[1], [0], [0], [1], [0, 0, 1, 1], [], []>} : vector<16x64xbf16>, vector<64x32xbf16>, vector<16x32xf32> -> vector<16x32xf32>
    %28 = arith.addf %24, %27 : vector<16x32xf32>
    %c0_15 = arith.constant 0 : index
    %c0_16 = arith.constant 0 : index
    %29 = vector.load %arg11[%c0_15, %c0_16] : memref<16x32xf32, #tpu.memory_space<vmem>>, vector<16x32xf32>
    tpu.vector_store %arg11[%c0_15, %c0_16], %28 {strides = array<i32>} : memref<16x32xf32, #tpu.memory_space<vmem>>, vector<16x32xf32>,
    %c0_i32_17 = arith.constant 0 : i32
    %30 = arith.cmpi eq, %arg1, %c0_i32_17 : i32
    %31 = arith.extui %30 : i1 to i32
    %c0_i32_18 = arith.constant 0 : i32
    %32 = arith.cmpi ne, %31, %c0_i32_18 : i32
    scf.if %32 {
      %c0_19 = arith.constant 0 : index
      %c0_20 = arith.constant 0 : index
      %33 = vector.load %arg2[%c0_19, %c0_20] : memref<16x32xbf16, #tpu.memory_space<vmem>>, vector<16x32xbf16>
      %34 = arith.extf %33 : vector<16x32xbf16> to vector<16x32xf32>
      %c0_21 = arith.constant 0 : index
      %c0_22 = arith.constant 0 : index
      %35 = vector.load %arg11[%c0_21, %c0_22] : memref<16x32xf32, #tpu.memory_space<vmem>>, vector<16x32xf32>
      %36 = arith.addf %34, %35 : vector<16x32xf32>
      %c0_23 = arith.constant 0 : index
      %c0_24 = arith.constant 0 : index
      %37 = vector.load %arg8[%c0_23, %c0_24] : memref<1x32xf32, #tpu.memory_space<vmem>>, vector<1x32xf32>
      %38 = vector.shape_cast %37 : vector<1x32xf32> to vector<32xf32>
      %39 = vector.shape_cast %38 : vector<32xf32> to vector<1x32xf32>
      %40 = vector.broadcast %39 : vector<1x32xf32> to vector<16x32xf32>
      %41 = arith.addf %36, %40 : vector<16x32xf32>
      %42 = arith.truncf %41 : vector<16x32xf32> to vector<16x32xbf16>
      %c0_25 = arith.constant 0 : index
      %c0_26 = arith.constant 0 : index
      %43 = vector.load %arg9[%c0_25, %c0_26] : memref<16x32xbf16, #tpu.memory_space<vmem>>, vector<16x32xbf16>
      tpu.vector_store %arg9[%c0_25, %c0_26], %42 {strides = array<i32>} : memref<16x32xbf16, #tpu.memory_space<vmem>>, vector<16x32xbf16>,
    } else {
    }
    return
  }
  func.func @transform_0(%arg0: i32, %arg1: i32) -> (i32, i32) {
    %c0_i32 = arith.constant 0 : i32
    %c0_i32_0 = arith.constant 0 : i32
    return %arg0, %c0_i32 : i32, i32
  }
  func.func @transform_1(%arg0: i32, %arg1: i32) -> (i32, i32) {
    %c0_i32 = arith.constant 0 : i32
    %c0_i32_0 = arith.constant 0 : i32
    %c0_i32_1 = arith.constant 0 : i32
    return %c0_i32, %c0_i32_0 : i32, i32
  }
  func.func @transform_2(%arg0: i32, %arg1: i32) -> (i32, i32) {
    %c0_i32 = arith.constant 0 : i32
    %c0_i32_0 = arith.constant 0 : i32
    %c0_i32_1 = arith.constant 0 : i32
    return %c0_i32, %c0_i32_0 : i32, i32
  }
  func.func @transform_3(%arg0: i32, %arg1: i32) -> (i32, i32) {
    %c0_i32 = arith.constant 0 : i32
    %c0_i32_0 = arith.constant 0 : i32
    return %c0_i32, %arg1 : i32, i32
  }
  func.func @transform_4(%arg0: i32, %arg1: i32) -> (i32, i32) {
    %c0_i32 = arith.constant 0 : i32
    %c0_i32_0 = arith.constant 0 : i32
    return %c0_i32, %arg1 : i32, i32
  }
  func.func @transform_5(%arg0: i32, %arg1: i32) -> (i32, i32) {
    %c0_i32 = arith.constant 0 : i32
    %c0_i32_0 = arith.constant 0 : i32
    return %arg1, %c0_i32 : i32, i32
  }
  func.func @transform_6(%arg0: i32, %arg1: i32) -> (i32, i32) {
    %c0_i32 = arith.constant 0 : i32
    %c0_i32_0 = arith.constant 0 : i32
    %c0_i32_1 = arith.constant 0 : i32
    return %c0_i32, %c0_i32_0 : i32, i32
  }
  func.func @transform_7(%arg0: i32, %arg1: i32) -> (i32, i32) {
    %c0_i32 = arith.constant 0 : i32
    %c0_i32_0 = arith.constant 0 : i32
    return %arg0, %c0_i32 : i32, i32
  }
}

</mosaic_0001>

<llo_original>
// kernel: tpu_custom_call.1
$region0: #{tpu_custom_call.1}
  #allocation0 [shape = 'u32[]', space=smem, size = 0x4, offset = 0x4, fixed_abs, tag = 'smem constant byte address 0x4 - core index']
  #allocation1 [shape = 'u32[72,128]{1,0:T(1,128)}', space=vmem, size = 0x9000, scoped, tag = 'internal scratch']
  %s0 = inlined_call_operand.hbm [shape: f32[8,128], index: 0, kind: input, shape index: {}]
  %s1 = inlined_call_operand.hbm [shape: f32[8,128], index: 1, kind: output, shape index: {}]
  %s2 = sld [smem:[#allocation0]]
  $region41: #{tpu_custom_call.1} parent=0
    _
  %s4 = ssub.s32 1, %s2
  %s5 = scalar_select 0, %s4, %s2
  $region1: #{tpu_custom_call.1} parent=0
    #allocation2 [shape = 'u8[4096]{0}', space=vmem, size = 0x1000, scoped, tag = 'input window, operand 0, single buffered']
    #allocation3 [shape = 's32[2]{0}', space=sflag, size = 0x8, scoped, tag = 'scoped memory for tpu_custom_call.1']
    #allocation4 [shape = 's32[2]{0}', space=sflag, size = 0x8, scoped, tag = 'scoped memory for tpu_custom_call.1']
    #allocation5 [shape = 'u8[4096]{0}', space=vmem, size = 0x1000, scoped, tag = 'output window, operand 0, single buffered']
    %6 = vsyncpa [#allocation3], 0
    %7 = vsyncpa [#allocation4], 0
    loop: start=0, step=1, limit=4
    $region2: #{tpu_custom_call.1} parent=1 // loop_pre_header
      _
    $region3: #{tpu_custom_call.1} parent=1 // loop_header
      %s9 = sphi 0, %s13
      %p10 = scmp.ge.s32.totalorder %s9, 4
      %s17 = sphi 0, %s17
      %s19 = sphi 0, %s17
      %s20 = sphi 0, %s19
      %s34 = sphi 0, %s20
      %s38 = sphi 0, %s38
      %s40 = sphi 0, %s38
      %s41 = sphi 0, %s40
      %s55 = sphi 0, %s41
    $region4: #{tpu_custom_call.1} parent=1 // loop_header_branch
      %12 = sbr.rel (%p10) target = $region8
    $region5: #{tpu_custom_call.1} parent=1 // loop_body
      %s14 = ssub.s32 %s9, 1
      %s15 = ssub.s32 %s9, 2
      %s16 = sadd.s32 %s9, 1
      %s18 = sadd.s32 %s17, 1
      %p21 = scmp.eq.s32.totalorder %s9, 1
      %p22 = scmp.ne.s32.totalorder %s17, %s19
      %p23 = scmp.eq.s32.totalorder %s9, 0
      %p24 = por %p22, %p23
      %p25 = scmp.ne.s32.totalorder %s17, %s19
      %p26 = scmp.eq.s32.totalorder %s14, 1
      %p27 = por %p25, %p26
      %p28 = scmp.ne.s32.totalorder %s19, %s20
      %p29 = scmp.eq.s32.totalorder %s14, 0
      %p30 = por %p28, %p29
      %p31 = scmp.ne.s32.totalorder %s19, %s20
      %p32 = scmp.eq.s32.totalorder %s15, 1
      %p33 = por %p31, %p32
      %p35 = scmp.ne.s32.totalorder %s20, %s34
      %p36 = scmp.eq.s32.totalorder %s15, 0
      %p37 = por %p35, %p36
      %s39 = sadd.s32 %s38, 1
      %p42 = scmp.eq.s32.totalorder %s9, 1
      %p43 = scmp.ne.s32.totalorder %s38, %s40
      %p44 = scmp.eq.s32.totalorder %s9, 0
      %p45 = por %p43, %p44
      %p46 = scmp.ne.s32.totalorder %s38, %s40
      %p47 = scmp.eq.s32.totalorder %s14, 1
      %p48 = por %p46, %p47
      %p49 = scmp.ne.s32.totalorder %s40, %s41
      %p50 = scmp.eq.s32.totalorder %s14, 0
      %p51 = por %p49, %p50
      %p52 = scmp.ne.s32.totalorder %s40, %s41
      %p53 = scmp.eq.s32.totalorder %s15, 1
      %p54 = por %p52, %p53
      %p56 = scmp.ne.s32.totalorder %s41, %s55
      %p57 = scmp.eq.s32.totalorder %s15, 0
      %p58 = por %p56, %p57
      %p59 = scmp.le.s32.totalorder 1, %s9
      %p60 = scmp.lt.s32.totalorder %s9, 3
      %p61 = pnand %p59, %p60
      %p62 = pneg %p61
      // Predicated region
      $region9: #{tpu_custom_call.1} parent=5 // pred_check
        _
      $region10: #{tpu_custom_call.1} parent=5 // pred_check_branch
        %64 = sbr.rel (%p61) target = $region12
      $region11: #{tpu_custom_call.1} parent=5 // pred_region
        %s65 = ssub.s32 %s9, 1
        // Predicated region
        $region13: #{tpu_custom_call.1} parent=11 // pred_check
          %p66 = pneg %p30
        $region14: #{tpu_custom_call.1} parent=11 // pred_check_branch
          %68 = sbr.rel (%p66) target = $region16
        $region15: #{tpu_custom_call.1} parent=11 // pred_region
          %70 = vsyncadd [#allocation3], 0
          %s72 = sshll.u32 %s0, 4
          %s73 = int_to_ptr.hbm [resolvable:$true] %s72
          %s74 = sshll.u32 [#allocation2], 4
          %s75 = int_to_ptr.vmem [resolvable:$true] %s74
          %77 = dma.hbm_to_vmem [thread:$0]  %s73, 128, %s75, [#allocation3]
        $region16: #{tpu_custom_call.1} parent=11 // pred_fallthru
          _
      $region12: #{tpu_custom_call.1} parent=5 // pred_fallthru
        _
      %p78 = scmp.lt.s32.totalorder %s9, 2
      // Predicated region
      $region17: #{tpu_custom_call.1} parent=5 // pred_check
        %p79 = pneg %p78
      $region18: #{tpu_custom_call.1} parent=5 // pred_check_branch
        %81 = sbr.rel (%p79) target = $region20
      $region19: #{tpu_custom_call.1} parent=5 // pred_region
        _
      $region20: #{tpu_custom_call.1} parent=5 // pred_fallthru
        _
      %p82 = scmp.le.s32.totalorder 1, %s9
      %p83 = scmp.lt.s32.totalorder %s9, 3
      %p84 = pnand %p82, %p83
      %p85 = pneg %p84
      // Predicated region
      $region21: #{tpu_custom_call.1} parent=5 // pred_check
        _
      $region22: #{tpu_custom_call.1} parent=5 // pred_check_branch
        %87 = sbr.rel (%p84) target = $region24
      $region23: #{tpu_custom_call.1} parent=5 // pred_region
        %s88 = ssub.s32 %s9, 1
        // Predicated region
        $region25: #{tpu_custom_call.1} parent=23 // pred_check
          %p89 = pneg %p30
        $region26: #{tpu_custom_call.1} parent=23 // pred_check_branch
          %91 = sbr.rel (%p89) target = $region28
        $region27: #{tpu_custom_call.1} parent=23 // pred_region
          %93 = dma.done [#allocation3], 128
        $region28: #{tpu_custom_call.1} parent=23 // pred_fallthru
          _
        %p94 = pneg %p30
        %p95 = pneg %p27
        %p96 = pneg %p51
        %p97 = pneg %p48
        %v98 = vld [vmem:[#allocation2] sm:$0xff]
        %v99 = vadd.f32 %v98, 1.0
        %100 = vst [vmem:[#allocation5] sm:$0xff] %v99
        // Predicated region
        $region29: #{tpu_custom_call.1} parent=23 // pred_check
          %p101 = pneg %p48
        $region30: #{tpu_custom_call.1} parent=23 // pred_check_branch
          %103 = sbr.rel (%p101) target = $region32
        $region31: #{tpu_custom_call.1} parent=23 // pred_region
          %105 = vsyncadd [#allocation4], 0
          %s107 = sshll.u32 [#allocation5], 4
          %s108 = int_to_ptr.vmem [resolvable:$true] %s107
          %s109 = sshll.u32 %s1, 4
          %s110 = int_to_ptr.hbm [resolvable:$true] %s109
          %112 = dma.vmem_to_hbm [thread:$0]  %s108, 128, %s110, [#allocation4]
        $region32: #{tpu_custom_call.1} parent=23 // pred_fallthru
          _
        // Predicated region
        $region33: #{tpu_custom_call.1} parent=23 // pred_check
          %p113 = pneg %p48
        $region34: #{tpu_custom_call.1} parent=23 // pred_check_branch
          %115 = sbr.rel (%p113) target = $region36
        $region35: #{tpu_custom_call.1} parent=23 // pred_region
          %117 = dma.done [#allocation4], 128
        $region36: #{tpu_custom_call.1} parent=23 // pred_fallthru
          _
      $region24: #{tpu_custom_call.1} parent=5 // pred_fallthru
        _
      %p118 = scmp.le.s32.totalorder 2, %s9
      // Predicated region
      $region37: #{tpu_custom_call.1} parent=5 // pred_check
        %p119 = pneg %p118
      $region38: #{tpu_custom_call.1} parent=5 // pred_check_branch
        %121 = sbr.rel (%p119) target = $region40
      $region39: #{tpu_custom_call.1} parent=5 // pred_region
        %s122 = ssub.s32 %s9, 2
      $region40: #{tpu_custom_call.1} parent=5 // pred_fallthru
        _
    $region6: #{tpu_custom_call.1} parent=1 // loop_footer
      %s13 = sadd.s32 1, %s9
    $region7: #{tpu_custom_call.1} parent=1 // loop_footer_branch
      %8 = sbr.rel target = $region3
    $region8: #{tpu_custom_call.1} parent=1 // loop_exit
      _
    %123 = vsyncpa [#allocation3], 1
    %s124 = scalar_lea.sflag [#allocation3], 1
    %125 = vsyncpa %s124, 1
    %126 = vsyncpa [#allocation4], 1
    %s127 = scalar_lea.sflag [#allocation4], 1
    %128 = vsyncpa %s127, 1

// kernel: bc_lm_forward.7
$region0: #{bc_lm_forward.7}
  #allocation0 [shape = 'u32[]', space=smem, size = 0x4, offset = 0x4, fixed_abs, tag = 'smem constant byte address 0x4 - core index']
  #allocation1 [shape = 'u32[72,128]{1,0:T(1,128)}', space=vmem, size = 0x9000, scoped, tag = 'internal scratch']
  %s0 = inlined_call_operand.vmem [shape: bf16[16,32], index: 0, kind: input, shape index: {}]
  %s1 = inlined_call_operand.vmem [shape: f32[1,32], index: 1, kind: input, shape index: {}]
  %s2 = inlined_call_operand.vmem [shape: f32[1,32], index: 2, kind: input, shape index: {}]
  %s3 = inlined_call_operand.vmem [shape: bf16[32,96], index: 3, kind: input, shape index: {}]
  %s4 = inlined_call_operand.vmem [shape: f32[1,96], index: 4, kind: input, shape index: {}]
  %s5 = inlined_call_operand.vmem [shape: bf16[16,32], index: 5, kind: output, shape index: {0}]
  %s6 = inlined_call_operand.vmem [shape: bf16[16,32], index: 6, kind: output, shape index: {1}]
  %s7 = inlined_call_operand.vmem [shape: bf16[16,32], index: 7, kind: output, shape index: {2}]
  %8 = xla_tuple %s5, %s6, %s7
  %s9 = sld [smem:[#allocation0]]
  $region46: #{bc_lm_forward.7} parent=0
    _
  %s11 = ssub.s32 1, %s9
  %s12 = scalar_select 0, %s11, %s9
  // Predicated region
  $region2: #{bc_lm_forward.7} parent=0 // pred_check
    _
  $region3: #{bc_lm_forward.7} parent=0 // pred_check_branch
    %14 = sbr.rel (0) target = $region5
  $region4: #{bc_lm_forward.7} parent=0 // pred_region
    _
  $region5: #{bc_lm_forward.7} parent=0 // pred_fallthru
    _
  // Predicated region
  $region6: #{bc_lm_forward.7} parent=0 // pred_check
    _
  $region7: #{bc_lm_forward.7} parent=0 // pred_check_branch
    %16 = sbr.rel (0) target = $region9
  $region8: #{bc_lm_forward.7} parent=0 // pred_region
    _
  $region9: #{bc_lm_forward.7} parent=0 // pred_fallthru
    _
  // Predicated region
  $region10: #{bc_lm_forward.7} parent=0 // pred_check
    _
  $region11: #{bc_lm_forward.7} parent=0 // pred_check_branch
    %18 = sbr.rel (0) target = $region13
  $region12: #{bc_lm_forward.7} parent=0 // pred_region
    _
  $region13: #{bc_lm_forward.7} parent=0 // pred_fallthru
    _
  // Predicated region
  $region14: #{bc_lm_forward.7} parent=0 // pred_check
    _
  $region15: #{bc_lm_forward.7} parent=0 // pred_check_branch
    %20 = sbr.rel (0) target = $region17
  $region16: #{bc_lm_forward.7} parent=0 // pred_region
    _
  $region17: #{bc_lm_forward.7} parent=0 // pred_fallthru
    _
  // Predicated region
  $region18: #{bc_lm_forward.7} parent=0 // pred_check
    _
  $region19: #{bc_lm_forward.7} parent=0 // pred_check_branch
    %22 = sbr.rel (0) target = $region21
  $region20: #{bc_lm_forward.7} parent=0 // pred_region
    _
  $region21: #{bc_lm_forward.7} parent=0 // pred_fallthru
    _
  %v24 = vld [vmem:[%s0] sm:$0xf]
  %v25 = vld [vmem:[%s0 + $0x4] sm:$0xf]
  %v26 = vunpack.c.l.bf16 %v24
  %v27 = vunpack.c.l.bf16 %v25
  %v28 = vld [vmem:[%s1] sm:$0x1]
  %v29 = vld [vmem:[%s2] sm:$0x1]
  %vm30 = vcmask 261120
  %v31 = vsel %vm30, %v26, 0.0
  %32 = vadd.xlane.f32.xlu0 %v31
  %v33 = vpop.xlane.xlu0 %32
  %v34 = vsel %vm30, %v27, 0.0
  %35 = vadd.xlane.f32.xlu0 %v34
  %v36 = vpop.xlane.xlu0 %35
  %v37 = vrcp.pop 32.0
  %v38 = vmul.f32 32.0, %v37
  %v39 = vsub.f32 1.0, %v38
  %v40 = vmul.f32 %v37, %v39
  %v41 = vadd.f32 %v37, %v40
  %vm42 = vweird.f32 %v37
  %v43 = vsel %vm42, %v37, %v41
  %v44 = vmul.f32 %v33, %v43
  %v45 = vmul.f32 %v36, %v43
  %v46 = vsub.f32 %v26, %v44
  %v47 = vsub.f32 %v27, %v45
  %v48 = vmul.f32 %v46, %v46
  %v49 = vmul.f32 %v47, %v47
  %v50 = vsel %vm30, %v48, 0.0
  %51 = vadd.xlane.f32.xlu0 %v50
  %v52 = vpop.xlane.xlu0 %51
  %v53 = vsel %vm30, %v49, 0.0
  %54 = vadd.xlane.f32.xlu0 %v53
  %v55 = vpop.xlane.xlu0 %54
  %v56 = vmul.f32 %v52, %v43
  %v57 = vmul.f32 %v55, %v43
  %v58 = vadd.f32 %v56, 1e-05
  %v59 = vadd.f32 %v57, 1e-05
  %v60 = vrsqrt.pop %v58
  %v61 = vmul.f32 %v60, %v58
  %v62 = vmul.f32 %v61, %v60
  %v63 = vmul.f32 0.5, %v62
  %v64 = vsub.f32 1.5, %v63
  %v65 = vmul.f32 %v60, %v64
  %vm66 = vweird.f32 %v58
  %vm67 = vweird.f32 %v60
  %vm68 = vmor %vm66, %vm67
  %v69 = vsel %vm68, %v60, %v65
  %v70 = vrsqrt.pop %v59
  %v71 = vmul.f32 %v70, %v59
  %v72 = vmul.f32 %v71, %v70
  %v73 = vmul.f32 0.5, %v72
  %v74 = vsub.f32 1.5, %v73
  %v75 = vmul.f32 %v70, %v74
  %vm76 = vweird.f32 %v59
  %vm77 = vweird.f32 %v70
  %vm78 = vmor %vm76, %vm77
  %v79 = vsel %vm78, %v70, %v75
  %v80 = vmul.f32 %v46, %v69
  %v81 = vmul.f32 %v47, %v79
  %v83 = vperm.slane %v28, 0
  %v85 = vmul.f32 %v80, %v83
  %v86 = vmul.f32 %v81, %v83
  %v88 = vperm.slane %v29, 0
  %v90 = vadd.f32 %v85, %v88
  %v91 = vadd.f32 %v86, %v88
  %v92 = vpack.c.bf16 %v91, %v90
  %v93 = vld [vmem:[%s3] sm:$0xf]
  %v94 = vld [vmem:[%s3 + $0x4] sm:$0xf]
  %v95 = vld [vmem:[%s3 + $0x8] sm:$0xf]
  %v96 = vld [vmem:[%s3 + $0xc] sm:$0xf]
  %v97 = vld [vmem:[%s4] sm:$0x1]
  %v99 = vperm.slane %v97, 0
  %v105 = vunpack.c.l.b16 %v93
  %v106 = vunpack.c.l.b16 %v94
  %v107 = vunpack.c.l.b16 %v95
  %v108 = vunpack.c.l.b16 %v96
  %v109 = vpack.c.b16 %v106, %v105
  %v110 = vpack.c.b16 %v108, %v107
  %v114 = vsel %vm30, %v92, 0
  %116 = vmatpush.bf16.msra.mxu0 0
  %117 = vmatpush.bf16.msra.mxu0 0
  %118 = vmatpush.bf16.msra.mxu0 0
  %119 = vmatpush.bf16.msra.mxu0 0
  %120 = vmatpush.bf16.msra.mxu0 0
  %121 = vmatpush.bf16.msra.mxu0 0
  %122 = vmatpush.bf16.msra.mxu0 %v110
  %123 = vmatpush.bf16.msra.mxu0 %v109
  %124 = vmatmul.bf16.gmra.mxu0 %v114
  %v125 = vpop.f32.mrf.mxu0
  %v126 = vadd.f32 %v99, %v125
  %v127 = vpop.f32.mrf.mxu0
  %v128 = vadd.f32 %v99, %v127
  %129 = vdwg.mxu0
  %v130 = vpack.c.bf16 %v126, %v126
  %v131 = vpack.c.bf16 %v128, %v128
  %vm132 = vcmask 257024
  %133 = vst.msk [vmem:[%s5] sm:$0xf] %vm132, %v130
  %134 = vst.msk [vmem:[%s5 + $0x4] sm:$0xf] %vm132, %v131
  %137 = vrot.lane.b32.xlu0 %v130, 96
  %v138 = vpop.permute.xlu0 %137
  %139 = vrot.lane.b32.xlu0 %v131, 96
  %v140 = vpop.permute.xlu0 %139
  %143 = vst.msk [vmem:[%s6] sm:$0xf] %vm132, %v138
  %144 = vst.msk [vmem:[%s6 + $0x4] sm:$0xf] %vm132, %v140
  %145 = vrot.lane.b32.xlu0 %v130, 64
  %v146 = vpop.permute.xlu0 %145
  %147 = vrot.lane.b32.xlu0 %v131, 64
  %v148 = vpop.permute.xlu0 %147
  %151 = vst.msk [vmem:[%s7] sm:$0xf] %vm132, %v146
  %152 = vst.msk [vmem:[%s7 + $0x4] sm:$0xf] %vm132, %v148
  // Predicated region
  $region22: #{bc_lm_forward.7} parent=0 // pred_check
    _
  $region23: #{bc_lm_forward.7} parent=0 // pred_check_branch
    %154 = sbr.rel (0) target = $region25
  $region24: #{bc_lm_forward.7} parent=0 // pred_region
    _
  $region25: #{bc_lm_forward.7} parent=0 // pred_fallthru
    _
  // Predicated region
  $region26: #{bc_lm_forward.7} parent=0 // pred_check
    _
  $region27: #{bc_lm_forward.7} parent=0 // pred_check_branch
    %156 = sbr.rel (0) target = $region29
  $region28: #{bc_lm_forward.7} parent=0 // pred_region
    _
  $region29: #{bc_lm_forward.7} parent=0 // pred_fallthru
    _
  // Predicated region
  $region30: #{bc_lm_forward.7} parent=0 // pred_check
    _
  $region31: #{bc_lm_forward.7} parent=0 // pred_check_branch
    %158 = sbr.rel (0) target = $region33
  $region32: #{bc_lm_forward.7} parent=0 // pred_region
    _
  $region33: #{bc_lm_forward.7} parent=0 // pred_fallthru
    _
  // Predicated region
  $region34: #{bc_lm_forward.7} parent=0 // pred_check
    _
  $region35: #{bc_lm_forward.7} parent=0 // pred_check_branch
    %160 = sbr.rel (0) target = $region37
  $region36: #{bc_lm_forward.7} parent=0 // pred_region
    _
  $region37: #{bc_lm_forward.7} parent=0 // pred_fallthru
    _
  // Predicated region
  $region38: #{bc_lm_forward.7} parent=0 // pred_check
    _
  $region39: #{bc_lm_forward.7} parent=0 // pred_check_branch
    %162 = sbr.rel (0) target = $region41
  $region40: #{bc_lm_forward.7} parent=0 // pred_region
    _
  $region41: #{bc_lm_forward.7} parent=0 // pred_fallthru
    _
  // Predicated region
  $region42: #{bc_lm_forward.7} parent=0 // pred_check
    _
  $region43: #{bc_lm_forward.7} parent=0 // pred_check_branch
    %164 = sbr.rel (0) target = $region45
  $region44: #{bc_lm_forward.7} parent=0 // pred_region
    _
  $region45: #{bc_lm_forward.7} parent=0 // pred_fallthru
    _

// kernel: bc_lm_forward.13
$region0: #{bc_lm_forward.13}
  #allocation0 [shape = 'u32[]', space=smem, size = 0x4, offset = 0x4, fixed_abs, tag = 'smem constant byte address 0x4 - core index']
  #allocation1 [shape = 'u32[72,128]{1,0:T(1,128)}', space=vmem, size = 0x9000, scoped, tag = 'internal scratch']
  %s0 = inlined_call_operand.vmem [shape: bf16[16,32], index: 0, kind: input, shape index: {}]
  %s1 = inlined_call_operand.vmem [shape: f32[1,32], index: 1, kind: input, shape index: {}]
  %s2 = inlined_call_operand.vmem [shape: f32[1,32], index: 2, kind: input, shape index: {}]
  %s3 = inlined_call_operand.vmem [shape: bf16[128,32], index: 3, kind: input, shape index: {}]
  %s4 = inlined_call_operand.hbm [shape: f32[16,128], index: 4, kind: output, shape index: {}]
  %s5 = sld [smem:[#allocation0]]
  $region26: #{bc_lm_forward.13} parent=0
    _
  %s7 = ssub.s32 1, %s5
  %s8 = scalar_select 0, %s7, %s5
  $region1: #{bc_lm_forward.13} parent=0
    #allocation2 [shape = 'u8[8192]{0}', space=vmem, size = 0x2000, scoped, tag = 'output window, operand 0, single buffered']
    #allocation3 [shape = 's32[1]{0}', space=sflag, size = 0x4, scoped, tag = 'scoped memory for bc_lm_forward.13']
    %9 = vsyncpa [#allocation3], 0
    // Predicated region
    $region2: #{bc_lm_forward.13} parent=1 // pred_check
      _
    $region3: #{bc_lm_forward.13} parent=1 // pred_check_branch
      %11 = sbr.rel (0) target = $region5
    $region4: #{bc_lm_forward.13} parent=1 // pred_region
      _
    $region5: #{bc_lm_forward.13} parent=1 // pred_fallthru
      _
    // Predicated region
    $region6: #{bc_lm_forward.13} parent=1 // pred_check
      _
    $region7: #{bc_lm_forward.13} parent=1 // pred_check_branch
      %13 = sbr.rel (0) target = $region9
    $region8: #{bc_lm_forward.13} parent=1 // pred_region
      _
    $region9: #{bc_lm_forward.13} parent=1 // pred_fallthru
      _
    // Predicated region
    $region10: #{bc_lm_forward.13} parent=1 // pred_check
      _
    $region11: #{bc_lm_forward.13} parent=1 // pred_check_branch
      %15 = sbr.rel (0) target = $region13
    $region12: #{bc_lm_forward.13} parent=1 // pred_region
      _
    $region13: #{bc_lm_forward.13} parent=1 // pred_fallthru
      _
    // Predicated region
    $region14: #{bc_lm_forward.13} parent=1 // pred_check
      _
    $region15: #{bc_lm_forward.13} parent=1 // pred_check_branch
      %17 = sbr.rel (0) target = $region17
    $region16: #{bc_lm_forward.13} parent=1 // pred_region
      _
    $region17: #{bc_lm_forward.13} parent=1 // pred_fallthru
      _
    %v18 = vld [vmem:[%s0] sm:$0xf]
    %v19 = vld [vmem:[%s0 + $0x4] sm:$0xf]
    %v20 = vunpack.c.l.bf16 %v18
    %v21 = vunpack.c.l.bf16 %v19
    %v22 = vld [vmem:[%s1] sm:$0x1]
    %v23 = vld [vmem:[%s2] sm:$0x1]
    %vm24 = vcmask 261120
    %v25 = vsel %vm24, %v20, 0.0
    %26 = vadd.xlane.f32.xlu0 %v25
    %v27 = vpop.xlane.xlu0 %26
    %v28 = vsel %vm24, %v21, 0.0
    %29 = vadd.xlane.f32.xlu0 %v28
    %v30 = vpop.xlane.xlu0 %29
    %v31 = vrcp.pop 32.0
    %v32 = vmul.f32 32.0, %v31
    %v33 = vsub.f32 1.0, %v32
    %v34 = vmul.f32 %v31, %v33
    %v35 = vadd.f32 %v31, %v34
    %vm36 = vweird.f32 %v31
    %v37 = vsel %vm36, %v31, %v35
    %v38 = vmul.f32 %v27, %v37
    %v39 = vmul.f32 %v30, %v37
    %v40 = vsub.f32 %v20, %v38
    %v41 = vsub.f32 %v21, %v39
    %v42 = vmul.f32 %v40, %v40
    %v43 = vmul.f32 %v41, %v41
    %v44 = vsel %vm24, %v42, 0.0
    %45 = vadd.xlane.f32.xlu0 %v44
    %v46 = vpop.xlane.xlu0 %45
    %v47 = vsel %vm24, %v43, 0.0
    %48 = vadd.xlane.f32.xlu0 %v47
    %v49 = vpop.xlane.xlu0 %48
    %v50 = vmul.f32 %v46, %v37
    %v51 = vmul.f32 %v49, %v37
    %v52 = vadd.f32 %v50, 1e-05
    %v53 = vadd.f32 %v51, 1e-05
    %v54 = vrsqrt.pop %v52
    %v55 = vmul.f32 %v54, %v52
    %v56 = vmul.f32 %v55, %v54
    %v57 = vmul.f32 0.5, %v56
    %v58 = vsub.f32 1.5, %v57
    %v59 = vmul.f32 %v54, %v58
    %vm60 = vweird.f32 %v52
    %vm61 = vweird.f32 %v54
    %vm62 = vmor %vm60, %vm61
    %v63 = vsel %vm62, %v54, %v59
    %v64 = vrsqrt.pop %v53
    %v65 = vmul.f32 %v64, %v53
    %v66 = vmul.f32 %v65, %v64
    %v67 = vmul.f32 0.5, %v66
    %v68 = vsub.f32 1.5, %v67
    %v69 = vmul.f32 %v64, %v68
    %vm70 = vweird.f32 %v53
    %vm71 = vweird.f32 %v64
    %vm72 = vmor %vm70, %vm71
    %v73 = vsel %vm72, %v64, %v69
    %v74 = vmul.f32 %v40, %v63
    %v75 = vmul.f32 %v41, %v73
    %v77 = vperm.slane %v22, 0
    %v79 = vmul.f32 %v74, %v77
    %v80 = vmul.f32 %v75, %v77
    %v82 = vperm.slane %v23, 0
    %v84 = vadd.f32 %v79, %v82
    %v85 = vadd.f32 %v80, %v82
    %v86 = vpack.c.bf16 %v85, %v84
    %v87 = vld [vmem:[%s3] sm:$0xf]
    %v88 = vld [vmem:[%s3 + $0x4] sm:$0xf]
    %v89 = vld [vmem:[%s3 + $0x8] sm:$0xf]
    %v90 = vld [vmem:[%s3 + $0xc] sm:$0xf]
    %v91 = vld [vmem:[%s3 + $0x10] sm:$0xf]
    %v92 = vld [vmem:[%s3 + $0x14] sm:$0xf]
    %v93 = vld [vmem:[%s3 + $0x18] sm:$0xf]
    %v94 = vld [vmem:[%s3 + $0x1c] sm:$0xf]
    %v95 = vld [vmem:[%s3 + $0x20] sm:$0xf]
    %v96 = vld [vmem:[%s3 + $0x24] sm:$0xf]
    %v97 = vld [vmem:[%s3 + $0x28] sm:$0xf]
    %v98 = vld [vmem:[%s3 + $0x2c] sm:$0xf]
    %v99 = vld [vmem:[%s3 + $0x30] sm:$0xf]
    %v100 = vld [vmem:[%s3 + $0x34] sm:$0xf]
    %v101 = vld [vmem:[%s3 + $0x38] sm:$0xf]
    %v102 = vld [vmem:[%s3 + $0x3c] sm:$0xf]
    %v119 = vunpack.c.l.b16 %v87
    %v120 = vunpack.c.l.b16 %v88
    %v121 = vunpack.c.l.b16 %v89
    %v122 = vunpack.c.l.b16 %v90
    %v123 = vunpack.c.l.b16 %v91
    %v124 = vunpack.c.l.b16 %v92
    %v125 = vunpack.c.l.b16 %v93
    %v126 = vunpack.c.l.b16 %v94
    %v127 = vunpack.c.l.b16 %v95
    %v128 = vunpack.c.l.b16 %v96
    %v129 = vunpack.c.l.b16 %v97
    %v130 = vunpack.c.l.b16 %v98
    %v131 = vunpack.c.l.b16 %v99
    %v132 = vunpack.c.l.b16 %v100
    %v133 = vunpack.c.l.b16 %v101
    %v134 = vunpack.c.l.b16 %v102
    %v135 = vpack.c.b16 %v120, %v119
    %v136 = vpack.c.b16 %v122, %v121
    %v137 = vpack.c.b16 %v124, %v123
    %v138 = vpack.c.b16 %v126, %v125
    %v139 = vpack.c.b16 %v128, %v127
    %v140 = vpack.c.b16 %v130, %v129
    %v141 = vpack.c.b16 %v132, %v131
    %v142 = vpack.c.b16 %v134, %v133
    %v144 = vsel %vm24, %v86, 0
    %v147 = vsel %vm24, %v135, 0
    %v150 = vsel %vm24, %v136, 0
    %v153 = vsel %vm24, %v137, 0
    %v156 = vsel %vm24, %v138, 0
    %v159 = vsel %vm24, %v139, 0
    %v162 = vsel %vm24, %v140, 0
    %v165 = vsel %vm24, %v141, 0
    %v168 = vsel %vm24, %v142, 0
    %170 = vmatpush.bf16.xpose.msra.mxu0 %v168
    %171 = vmatpush.bf16.xpose.msra.mxu0 %v165
    %172 = vmatpush.bf16.xpose.msra.mxu0 %v162
    %173 = vmatpush.bf16.xpose.msra.mxu0 %v159
    %174 = vmatpush.bf16.xpose.msra.mxu0 %v156
    %175 = vmatpush.bf16.xpose.msra.mxu0 %v153
    %176 = vmatpush.bf16.xpose.msra.mxu0 %v150
    %177 = vmatpush.bf16.xpose.msra.mxu0 %v147
    %178 = vmatmul.bf16.gmra.mxu0 %v144
    %v179 = vpop.f32.mrf.mxu0
    %v180 = vadd.f32 0.0, %v179
    %v181 = vpop.f32.mrf.mxu0
    %v182 = vadd.f32 0.0, %v181
    %183 = vdwg.mxu0
    %184 = vst [vmem:[#allocation2] sm:$0xff] %v180
    %185 = vst [vmem:[#allocation2 + $0x8] sm:$0xff] %v182
    // Predicated region
    $region18: #{bc_lm_forward.13} parent=1 // pred_check
      _
    $region19: #{bc_lm_forward.13} parent=1 // pred_check_branch
      %187 = sbr.rel (0) target = $region21
    $region20: #{bc_lm_forward.13} parent=1 // pred_region
      %189 = vsyncadd [#allocation3], 0
      %s190 = sshll.u32 [#allocation2], 4
      %s191 = int_to_ptr.vmem [resolvable:$true] %s190
      %s192 = sshll.u32 %s4, 4
      %s193 = int_to_ptr.hbm [resolvable:$true] %s192
      %198 = dma.vmem_to_hbm [thread:$0]  %s191, 256, %s193, [#allocation3], 128, 128, 8
    $region21: #{bc_lm_forward.13} parent=1 // pred_fallthru
      _
    // Predicated region
    $region22: #{bc_lm_forward.13} parent=1 // pred_check
      _
    $region23: #{bc_lm_forward.13} parent=1 // pred_check_branch
      %200 = sbr.rel (0) target = $region25
    $region24: #{bc_lm_forward.13} parent=1 // pred_region
      %202 = dma.done [#allocation3], 256
    $region25: #{bc_lm_forward.13} parent=1 // pred_fallthru
      _
    %203 = vsyncpa [#allocation3], 1

// kernel: bc_lm_forward.9
$region0: #{bc_lm_forward.9}
  #allocation0 [shape = 'u32[]', space=smem, size = 0x4, offset = 0x4, fixed_abs, tag = 'smem constant byte address 0x4 - core index']
  #allocation1 [shape = 'u32[72,128]{1,0:T(1,128)}', space=vmem, size = 0x9000, scoped, tag = 'internal scratch']
  #allocation2 [shape = 'bf16[16,32]{1,0:T(8,128)(2,1)}', space=vmem, size = 0x1000, scoped, tag = 'scratch operand']
  #allocation3 [shape = 'f32[16,32]{1,0:T(8,128)}', space=vmem, size = 0x2000, scoped, tag = 'scratch operand']
  %s0 = inlined_call_operand.vmem [shape: bf16[16,32], index: 0, kind: input, shape index: {}]
  %s1 = inlined_call_operand.vmem [shape: f32[1,32], index: 1, kind: input, shape index: {}]
  %s2 = inlined_call_operand.vmem [shape: f32[1,32], index: 2, kind: input, shape index: {}]
  %s3 = inlined_call_operand.vmem [shape: bf16[32,64], index: 3, kind: input, shape index: {}]
  %s4 = inlined_call_operand.vmem [shape: f32[1,64], index: 4, kind: input, shape index: {}]
  %s5 = inlined_call_operand.vmem [shape: bf16[64,32], index: 5, kind: input, shape index: {}]
  %s6 = inlined_call_operand.vmem [shape: f32[1,32], index: 6, kind: input, shape index: {}]
  %s7 = inlined_call_operand.vmem [shape: bf16[16,32], index: 7, kind: output, shape index: {}]
  %s8 = sld [smem:[#allocation0]]
  $region46: #{bc_lm_forward.9} parent=0
    _
  %s10 = ssub.s32 1, %s8
  %s11 = scalar_select 0, %s10, %s8
  // Predicated region
  $region2: #{bc_lm_forward.9} parent=0 // pred_check
    _
  $region3: #{bc_lm_forward.9} parent=0 // pred_check_branch
    %13 = sbr.rel (0) target = $region5
  $region4: #{bc_lm_forward.9} parent=0 // pred_region
    _
  $region5: #{bc_lm_forward.9} parent=0 // pred_fallthru
    _
  // Predicated region
  $region6: #{bc_lm_forward.9} parent=0 // pred_check
    _
  $region7: #{bc_lm_forward.9} parent=0 // pred_check_branch
    %15 = sbr.rel (0) target = $region9
  $region8: #{bc_lm_forward.9} parent=0 // pred_region
    _
  $region9: #{bc_lm_forward.9} parent=0 // pred_fallthru
    _
  // Predicated region
  $region10: #{bc_lm_forward.9} parent=0 // pred_check
    _
  $region11: #{bc_lm_forward.9} parent=0 // pred_check_branch
    %17 = sbr.rel (0) target = $region13
  $region12: #{bc_lm_forward.9} parent=0 // pred_region
    _
  $region13: #{bc_lm_forward.9} parent=0 // pred_fallthru
    _
  // Predicated region
  $region14: #{bc_lm_forward.9} parent=0 // pred_check
    _
  $region15: #{bc_lm_forward.9} parent=0 // pred_check_branch
    %19 = sbr.rel (0) target = $region17
  $region16: #{bc_lm_forward.9} parent=0 // pred_region
    _
  $region17: #{bc_lm_forward.9} parent=0 // pred_fallthru
    _
  // Predicated region
  $region18: #{bc_lm_forward.9} parent=0 // pred_check
    _
  $region19: #{bc_lm_forward.9} parent=0 // pred_check_branch
    %21 = sbr.rel (0) target = $region21
  $region20: #{bc_lm_forward.9} parent=0 // pred_region
    _
  $region21: #{bc_lm_forward.9} parent=0 // pred_fallthru
    _
  // Predicated region
  $region22: #{bc_lm_forward.9} parent=0 // pred_check
    _
  $region23: #{bc_lm_forward.9} parent=0 // pred_check_branch
    %23 = sbr.rel (0) target = $region25
  $region24: #{bc_lm_forward.9} parent=0 // pred_region
    _
  $region25: #{bc_lm_forward.9} parent=0 // pred_fallthru
    _
  // Predicated region
  $region26: #{bc_lm_forward.9} parent=0 // pred_check
    _
  $region27: #{bc_lm_forward.9} parent=0 // pred_check_branch
    %25 = sbr.rel (0) target = $region29
  $region28: #{bc_lm_forward.9} parent=0 // pred_region
    _
  $region29: #{bc_lm_forward.9} parent=0 // pred_fallthru
    _
  %p27 = scmp.eq.s32.totalorder 0, 0
  // Predicated region
  $region30: #{bc_lm_forward.9} parent=0 // pred_check
    %p28 = pneg %p27
  $region31: #{bc_lm_forward.9} parent=0 // pred_check_branch
    %30 = sbr.rel (%p28) target = $region33
  $region32: #{bc_lm_forward.9} parent=0 // pred_region
    %v31 = vld [vmem:[%s0] sm:$0xf]
    %v32 = vld [vmem:[%s0 + $0x4] sm:$0xf]
    %v33 = vunpack.c.l.bf16 %v31
    %v34 = vunpack.c.l.bf16 %v32
    %v35 = vld [vmem:[%s1] sm:$0x1]
    %v36 = vld [vmem:[%s2] sm:$0x1]
    %vm37 = vcmask 261120
    %v38 = vsel %vm37, %v33, 0.0
    %39 = vadd.xlane.f32.xlu0 %v38
    %v40 = vpop.xlane.xlu0 %39
    %v41 = vsel %vm37, %v34, 0.0
    %42 = vadd.xlane.f32.xlu0 %v41
    %v43 = vpop.xlane.xlu0 %42
    %v44 = vrcp.pop 32.0
    %v45 = vmul.f32 32.0, %v44
    %v46 = vsub.f32 1.0, %v45
    %v47 = vmul.f32 %v44, %v46
    %v48 = vadd.f32 %v44, %v47
    %vm49 = vweird.f32 %v44
    %v50 = vsel %vm49, %v44, %v48
    %v51 = vmul.f32 %v40, %v50
    %v52 = vmul.f32 %v43, %v50
    %v53 = vsub.f32 %v33, %v51
    %v54 = vsub.f32 %v34, %v52
    %v55 = vmul.f32 %v53, %v53
    %v56 = vmul.f32 %v54, %v54
    %v57 = vsel %vm37, %v55, 0.0
    %58 = vadd.xlane.f32.xlu0 %v57
    %v59 = vpop.xlane.xlu0 %58
    %v60 = vsel %vm37, %v56, 0.0
    %61 = vadd.xlane.f32.xlu0 %v60
    %v62 = vpop.xlane.xlu0 %61
    %v63 = vmul.f32 %v59, %v50
    %v64 = vmul.f32 %v62, %v50
    %v65 = vadd.f32 %v63, 1e-05
    %v66 = vadd.f32 %v64, 1e-05
    %v67 = vrsqrt.pop %v65
    %v68 = vmul.f32 %v67, %v65
    %v69 = vmul.f32 %v68, %v67
    %v70 = vmul.f32 0.5, %v69
    %v71 = vsub.f32 1.5, %v70
    %v72 = vmul.f32 %v67, %v71
    %vm73 = vweird.f32 %v65
    %vm74 = vweird.f32 %v67
    %vm75 = vmor %vm73, %vm74
    %v76 = vsel %vm75, %v67, %v72
    %v77 = vrsqrt.pop %v66
    %v78 = vmul.f32 %v77, %v66
    %v79 = vmul.f32 %v78, %v77
    %v80 = vmul.f32 0.5, %v79
    %v81 = vsub.f32 1.5, %v80
    %v82 = vmul.f32 %v77, %v81
    %vm83 = vweird.f32 %v66
    %vm84 = vweird.f32 %v77
    %vm85 = vmor %vm83, %vm84
    %v86 = vsel %vm85, %v77, %v82
    %v87 = vmul.f32 %v53, %v76
    %v88 = vmul.f32 %v54, %v86
    %v90 = vperm.slane %v35, 0
    %v92 = vmul.f32 %v87, %v90
    %v93 = vmul.f32 %v88, %v90
    %v95 = vperm.slane %v36, 0
    %v97 = vadd.f32 %v92, %v95
    %v98 = vadd.f32 %v93, %v95
    %v99 = vpack.c.bf16 %v97, %v97
    %v100 = vpack.c.bf16 %v98, %v98
    %vm101 = vcmask 257024
    %102 = vst.msk [vmem:[#allocation2] sm:$0xf] %vm101, %v99
    %103 = vst.msk [vmem:[#allocation2 + $0x4] sm:$0xf] %vm101, %v100
    %104 = vst.msk [vmem:[#allocation3] sm:$0xff] %vm37, 0.0
    %105 = vst.msk [vmem:[#allocation3 + $0x8] sm:$0xff] %vm37, 0.0
  $region33: #{bc_lm_forward.9} parent=0 // pred_fallthru
    _
  %v106 = vld [vmem:[#allocation2] sm:$0xf]
  %v107 = vld [vmem:[#allocation2 + $0x4] sm:$0xf]
  %v108 = vld [vmem:[%s3] sm:$0xf]
  %v109 = vld [vmem:[%s3 + $0x4] sm:$0xf]
  %v110 = vld [vmem:[%s3 + $0x8] sm:$0xf]
  %v111 = vld [vmem:[%s3 + $0xc] sm:$0xf]
  %v112 = vld [vmem:[%s4] sm:$0x1]
  %v114 = vperm.slane %v112, 0
  %v118 = vunpack.c.l.b16 %v106
  %v119 = vunpack.c.l.b16 %v107
  %v120 = vpack.c.b16 %v119, %v118
  %v125 = vunpack.c.l.b16 %v108
  %v126 = vunpack.c.l.b16 %v109
  %v127 = vunpack.c.l.b16 %v110
  %v128 = vunpack.c.l.b16 %v111
  %v129 = vpack.c.b16 %v126, %v125
  %v130 = vpack.c.b16 %v128, %v127
  %vm133 = vcmask 261120
  %v135 = vsel %vm133, %v120, 0
  %137 = vmatpush.bf16.msra.mxu0 0
  %138 = vmatpush.bf16.msra.mxu0 0
  %139 = vmatpush.bf16.msra.mxu0 0
  %140 = vmatpush.bf16.msra.mxu0 0
  %141 = vmatpush.bf16.msra.mxu0 0
  %142 = vmatpush.bf16.msra.mxu0 0
  %143 = vmatpush.bf16.msra.mxu0 %v130
  %144 = vmatpush.bf16.msra.mxu0 %v129
  %145 = vmatmul.bf16.gmra.mxu0 %v135
  %v146 = vpop.f32.mrf.mxu0
  %v147 = vadd.f32 %v114, %v146
  %v148 = vpop.f32.mrf.mxu0
  %v149 = vadd.f32 %v114, %v148
  %150 = vdwg.mxu0
  %v151 = vmul.f32 %v147, 0.5
  %v152 = vmul.f32 %v149, 0.5
  %v153 = vmul.f32 %v147, 0.044715
  %v154 = vmul.f32 %v149, 0.044715
  %v155 = vmul.f32 %v153, %v147
  %v156 = vmul.f32 %v154, %v149
  %v157 = vmul.f32 %v155, %v147
  %v158 = vmul.f32 %v156, %v149
  %v159 = vadd.f32 %v147, %v157
  %v160 = vadd.f32 %v149, %v158
  %v161 = vmul.f32 %v159, 0.7978846
  %v162 = vmul.f32 %v160, 0.7978846
  %v163 = vtanh.pop %v161
  %v164 = vtanh.pop %v162
  %v165 = vadd.f32 %v163, 1.0
  %v166 = vadd.f32 %v164, 1.0
  %v167 = vmul.f32 %v151, %v165
  %v168 = vmul.f32 %v152, %v166
  %v169 = vld [vmem:[#allocation3] sm:$0xff]
  %v170 = vld [vmem:[#allocation3 + $0x8] sm:$0xff]
  %v171 = vpack.c.bf16 %v168, %v167
  %v172 = vld [vmem:[%s5] sm:$0xf]
  %v173 = vld [vmem:[%s5 + $0x4] sm:$0xf]
  %v174 = vld [vmem:[%s5 + $0x8] sm:$0xf]
  %v175 = vld [vmem:[%s5 + $0xc] sm:$0xf]
  %v176 = vld [vmem:[%s5 + $0x10] sm:$0xf]
  %v177 = vld [vmem:[%s5 + $0x14] sm:$0xf]
  %v178 = vld [vmem:[%s5 + $0x18] sm:$0xf]
  %v179 = vld [vmem:[%s5 + $0x1c] sm:$0xf]
  %v188 = vunpack.c.l.b16 %v172
  %v189 = vunpack.c.l.b16 %v173
  %v190 = vunpack.c.l.b16 %v174
  %v191 = vunpack.c.l.b16 %v175
  %v192 = vunpack.c.l.b16 %v176
  %v193 = vunpack.c.l.b16 %v177
  %v194 = vunpack.c.l.b16 %v178
  %v195 = vunpack.c.l.b16 %v179
  %v196 = vpack.c.b16 %v189, %v188
  %v197 = vpack.c.b16 %v191, %v190
  %v198 = vpack.c.b16 %v193, %v192
  %v199 = vpack.c.b16 %v195, %v194
  %vm204 = vcmask 523264
  %v206 = vsel %vm204, %v171, 0
  %208 = vmatpush.bf16.msra.mxu0 0
  %209 = vmatpush.bf16.msra.mxu0 0
  %210 = vmatpush.bf16.msra.mxu0 0
  %211 = vmatpush.bf16.msra.mxu0 0
  %212 = vmatpush.bf16.msra.mxu0 %v199
  %213 = vmatpush.bf16.msra.mxu0 %v198
  %214 = vmatpush.bf16.msra.mxu0 %v197
  %215 = vmatpush.bf16.msra.mxu0 %v196
  %216 = vmatmul.bf16.gmra.mxu0 %v206
  %v217 = vpop.f32.mrf.mxu0
  %v218 = vadd.f32 0.0, %v217
  %v219 = vpop.f32.mrf.mxu0
  %v220 = vadd.f32 0.0, %v219
  %221 = vdwg.mxu0
  %v222 = vadd.f32 %v169, %v218
  %v223 = vadd.f32 %v170, %v220
  %224 = vst.msk [vmem:[#allocation3] sm:$0xff] %vm133, %v222
  %225 = vst.msk [vmem:[#allocation3 + $0x8] sm:$0xff] %vm133, %v223
  // Predicated region
  $region34: #{bc_lm_forward.9} parent=0 // pred_check
    %p226 = pneg %p27
  $region35: #{bc_lm_forward.9} parent=0 // pred_check_branch
    %228 = sbr.rel (%p226) target = $region37
  $region36: #{bc_lm_forward.9} parent=0 // pred_region
    %v229 = vld [vmem:[%s0] sm:$0xf]
    %v230 = vld [vmem:[%s0 + $0x4] sm:$0xf]
    %v231 = vunpack.c.l.bf16 %v229
    %v232 = vunpack.c.l.bf16 %v230
    %v233 = vld [vmem:[#allocation3] sm:$0xff]
    %v234 = vld [vmem:[#allocation3 + $0x8] sm:$0xff]
    %v235 = vadd.f32 %v231, %v233
    %v236 = vadd.f32 %v232, %v234
    %v237 = vld [vmem:[%s6] sm:$0x1]
    %v239 = vperm.slane %v237, 0
    %v241 = vadd.f32 %v235, %v239
    %v242 = vadd.f32 %v236, %v239
    %v243 = vpack.c.bf16 %v241, %v241
    %v244 = vpack.c.bf16 %v242, %v242
    %vm245 = vcmask 257024
    %246 = vst.msk [vmem:[%s7] sm:$0xf] %vm245, %v243
    %247 = vst.msk [vmem:[%s7 + $0x4] sm:$0xf] %vm245, %v244
  $region37: #{bc_lm_forward.9} parent=0 // pred_fallthru
    _
  // Predicated region
  $region38: #{bc_lm_forward.9} parent=0 // pred_check
    _
  $region39: #{bc_lm_forward.9} parent=0 // pred_check_branch
    %249 = sbr.rel (0) target = $region41
  $region40: #{bc_lm_forward.9} parent=0 // pred_region
    _
  $region41: #{bc_lm_forward.9} parent=0 // pred_fallthru
    _
  // Predicated region
  $region42: #{bc_lm_forward.9} parent=0 // pred_check
    _
  $region43: #{bc_lm_forward.9} parent=0 // pred_check_branch
    %251 = sbr.rel (0) target = $region45
  $region44: #{bc_lm_forward.9} parent=0 // pred_region
    _
  $region45: #{bc_lm_forward.9} parent=0 // pred_fallthru
    _

// kernel: bc_lm_forward.8
$region0: #{bc_lm_forward.8}
  #allocation0 [shape = 'u32[]', space=smem, size = 0x4, offset = 0x4, fixed_abs, tag = 'smem constant byte address 0x4 - core index']
  #allocation1 [shape = 'u32[72,128]{1,0:T(1,128)}', space=vmem, size = 0x9000, scoped, tag = 'internal scratch']
  #allocation2 [shape = 'bf16[2,8,16]{2,1,0:T(8,128)(2,1)}', space=vmem, size = 0x1000, scoped, tag = 'scratch operand']
  #allocation3 [shape = 'f32[2,8,1]{2,1,0:T(8,128)}', space=vmem, size = 0x2000, scoped, tag = 'scratch operand']
  #allocation4 [shape = 'f32[2,8,1]{2,1,0:T(8,128)}', space=vmem, size = 0x2000, scoped, tag = 'scratch operand']
  #allocation5 [shape = 'f32[2,8,16]{2,1,0:T(8,128)}', space=vmem, size = 0x2000, scoped, tag = 'scratch operand']
  %s0 = inlined_call_operand.vmem [shape: bf16[2,8,32], index: 0, kind: input, shape index: {}]
  %s1 = inlined_call_operand.vmem [shape: bf16[2,8,32], index: 1, kind: input, shape index: {}]
  %s2 = inlined_call_operand.vmem [shape: bf16[2,8,32], index: 2, kind: input, shape index: {}]
  %s3 = inlined_call_operand.vmem [shape: bf16[2,8,32], index: 3, kind: input, shape index: {}]
  %s4 = inlined_call_operand.vmem [shape: bf16[32,32], index: 4, kind: input, shape index: {}]
  %s5 = inlined_call_operand.vmem [shape: f32[1,32], index: 5, kind: input, shape index: {}]
  %s6 = inlined_call_operand.vmem [shape: bf16[2,8,32], index: 6, kind: output, shape index: {}]
  %s7 = sld [smem:[#allocation0]]
  $region69: #{bc_lm_forward.8} parent=0
    _
  %s9 = ssub.s32 1, %s7
  %s10 = scalar_select 0, %s9, %s7
  loop: start=0, step=1, limit=4
  $region2: #{bc_lm_forward.8} parent=0 // loop_pre_header
    _
  $region3: #{bc_lm_forward.8} parent=0 // loop_header
    %s12 = sphi 0, %s16
    %p13 = scmp.ge.s32.totalorder %s12, 4
    %s19 = sphi 0, %s38
    %s20 = sphi 0, %s34
    %s21 = sphi 0, %s30
    %s22 = sphi 0, %s19
    %s23 = sphi 0, %s20
    %s24 = sphi 0, %s21
    %s25 = sphi 0, %s22
    %s26 = sphi 0, %s23
    %s27 = sphi 0, %s24
    %s43 = sphi 0, %s45
    %s46 = sphi 0, %s43
    %s47 = sphi 0, %s46
    %s63 = sphi 0, %s47
    %s71 = sphi 0, %s73
    %s74 = sphi 0, %s71
    %s75 = sphi 0, %s74
    %s91 = sphi 0, %s75
    %s99 = sphi 0, %s101
    %s102 = sphi 0, %s99
    %s103 = sphi 0, %s102
    %s119 = sphi 0, %s103
    %s127 = sphi 0, %s129
    %s130 = sphi 0, %s127
    %s131 = sphi 0, %s130
    %s147 = sphi 0, %s131
    %s151 = sphi 0, %s151
    %s153 = sphi 0, %s151
    %s154 = sphi 0, %s153
    %s168 = sphi 0, %s154
    %s172 = sphi 0, %s172
    %s174 = sphi 0, %s172
    %s175 = sphi 0, %s174
    %s189 = sphi 0, %s175
    %s197 = sphi 0, %s199
    %s200 = sphi 0, %s197
    %s201 = sphi 0, %s200
    %s217 = sphi 0, %s201
  $region4: #{bc_lm_forward.8} parent=0 // loop_header_branch
    %15 = sbr.rel (%p13) target = $region8
  $region5: #{bc_lm_forward.8} parent=0 // loop_body
    %s17 = ssub.s32 %s12, 1
    %s18 = ssub.s32 %s12, 2
    %s28 = sadd.s32 1, %s21
    %p29 = scmp.ge.s32.totalorder %s28, 1
    %s30 = scalar_select %p29, 0, %s28
    %s31 = sadd.s32 1, %s20
    %s32 = scalar_select %p29, %s31, %s20
    %p33 = scmp.ge.s32.totalorder %s32, 1
    %s34 = scalar_select %p33, 0, %s32
    %s35 = sadd.s32 1, %s19
    %s36 = scalar_select %p33, %s35, %s19
    %p37 = scmp.ge.s32.totalorder %s36, 2
    %s38 = scalar_select %p37, 0, %s36
    %s39 = ssub.s32 %s19, %s38
    %s40 = ssub.s32 %s20, %s34
    %s41 = sor.u32 %s39, %s40
    %p42 = scmp.eq.s32.totalorder %s41, 0
    %s44 = sadd.s32 %s43, 1
    %s45 = scalar_select %p42, %s43, %s44
    %p48 = pneg %p42
    %p49 = scmp.eq.s32.totalorder %s12, 1
    %p50 = por %p48, %p49
    %p51 = scmp.ne.s32.totalorder %s43, %s46
    %p52 = scmp.eq.s32.totalorder %s12, 0
    %p53 = por %p51, %p52
    %p54 = scmp.ne.s32.totalorder %s43, %s46
    %p55 = scmp.eq.s32.totalorder %s17, 1
    %p56 = por %p54, %p55
    %p57 = scmp.ne.s32.totalorder %s46, %s47
    %p58 = scmp.eq.s32.totalorder %s17, 0
    %p59 = por %p57, %p58
    %p60 = scmp.ne.s32.totalorder %s46, %s47
    %p61 = scmp.eq.s32.totalorder %s18, 1
    %p62 = por %p60, %p61
    %p64 = scmp.ne.s32.totalorder %s47, %s63
    %p65 = scmp.eq.s32.totalorder %s18, 0
    %p66 = por %p64, %p65
    %s67 = ssub.s32 %s19, %s38
    %s68 = ssub.s32 %s20, %s34
    %s69 = sor.u32 %s67, %s68
    %p70 = scmp.eq.s32.totalorder %s69, 0
    %s72 = sadd.s32 %s71, 1
    %s73 = scalar_select %p70, %s71, %s72
    %p76 = pneg %p70
    %p77 = scmp.eq.s32.totalorder %s12, 1
    %p78 = por %p76, %p77
    %p79 = scmp.ne.s32.totalorder %s71, %s74
    %p80 = scmp.eq.s32.totalorder %s12, 0
    %p81 = por %p79, %p80
    %p82 = scmp.ne.s32.totalorder %s71, %s74
    %p83 = scmp.eq.s32.totalorder %s17, 1
    %p84 = por %p82, %p83
    %p85 = scmp.ne.s32.totalorder %s74, %s75
    %p86 = scmp.eq.s32.totalorder %s17, 0
    %p87 = por %p85, %p86
    %p88 = scmp.ne.s32.totalorder %s74, %s75
    %p89 = scmp.eq.s32.totalorder %s18, 1
    %p90 = por %p88, %p89
    %p92 = scmp.ne.s32.totalorder %s75, %s91
    %p93 = scmp.eq.s32.totalorder %s18, 0
    %p94 = por %p92, %p93
    %s95 = ssub.s32 %s19, %s38
    %s96 = ssub.s32 %s21, %s30
    %s97 = sor.u32 %s95, %s96
    %p98 = scmp.eq.s32.totalorder %s97, 0
    %s100 = sadd.s32 %s99, 1
    %s101 = scalar_select %p98, %s99, %s100
    %p104 = pneg %p98
    %p105 = scmp.eq.s32.totalorder %s12, 1
    %p106 = por %p104, %p105
    %p107 = scmp.ne.s32.totalorder %s99, %s102
    %p108 = scmp.eq.s32.totalorder %s12, 0
    %p109 = por %p107, %p108
    %p110 = scmp.ne.s32.totalorder %s99, %s102
    %p111 = scmp.eq.s32.totalorder %s17, 1
    %p112 = por %p110, %p111
    %p113 = scmp.ne.s32.totalorder %s102, %s103
    %p114 = scmp.eq.s32.totalorder %s17, 0
    %p115 = por %p113, %p114
    %p116 = scmp.ne.s32.totalorder %s102, %s103
    %p117 = scmp.eq.s32.totalorder %s18, 1
    %p118 = por %p116, %p117
    %p120 = scmp.ne.s32.totalorder %s103, %s119
    %p121 = scmp.eq.s32.totalorder %s18, 0
    %p122 = por %p120, %p121
    %s123 = ssub.s32 %s19, %s38
    %s124 = ssub.s32 %s21, %s30
    %s125 = sor.u32 %s123, %s124
    %p126 = scmp.eq.s32.totalorder %s125, 0
    %s128 = sadd.s32 %s127, 1
    %s129 = scalar_select %p126, %s127, %s128
    %p132 = pneg %p126
    %p133 = scmp.eq.s32.totalorder %s12, 1
    %p134 = por %p132, %p133
    %p135 = scmp.ne.s32.totalorder %s127, %s130
    %p136 = scmp.eq.s32.totalorder %s12, 0
    %p137 = por %p135, %p136
    %p138 = scmp.ne.s32.totalorder %s127, %s130
    %p139 = scmp.eq.s32.totalorder %s17, 1
    %p140 = por %p138, %p139
    %p141 = scmp.ne.s32.totalorder %s130, %s131
    %p142 = scmp.eq.s32.totalorder %s17, 0
    %p143 = por %p141, %p142
    %p144 = scmp.ne.s32.totalorder %s130, %s131
    %p145 = scmp.eq.s32.totalorder %s18, 1
    %p146 = por %p144, %p145
    %p148 = scmp.ne.s32.totalorder %s131, %s147
    %p149 = scmp.eq.s32.totalorder %s18, 0
    %p150 = por %p148, %p149
    %s152 = sadd.s32 %s151, 1
    %p155 = scmp.eq.s32.totalorder %s12, 1
    %p156 = scmp.ne.s32.totalorder %s151, %s153
    %p157 = scmp.eq.s32.totalorder %s12, 0
    %p158 = por %p156, %p157
    %p159 = scmp.ne.s32.totalorder %s151, %s153
    %p160 = scmp.eq.s32.totalorder %s17, 1
    %p161 = por %p159, %p160
    %p162 = scmp.ne.s32.totalorder %s153, %s154
    %p163 = scmp.eq.s32.totalorder %s17, 0
    %p164 = por %p162, %p163
    %p165 = scmp.ne.s32.totalorder %s153, %s154
    %p166 = scmp.eq.s32.totalorder %s18, 1
    %p167 = por %p165, %p166
    %p169 = scmp.ne.s32.totalorder %s154, %s168
    %p170 = scmp.eq.s32.totalorder %s18, 0
    %p171 = por %p169, %p170
    %s173 = sadd.s32 %s172, 1
    %p176 = scmp.eq.s32.totalorder %s12, 1
    %p177 = scmp.ne.s32.totalorder %s172, %s174
    %p178 = scmp.eq.s32.totalorder %s12, 0
    %p179 = por %p177, %p178
    %p180 = scmp.ne.s32.totalorder %s172, %s174
    %p181 = scmp.eq.s32.totalorder %s17, 1
    %p182 = por %p180, %p181
    %p183 = scmp.ne.s32.totalorder %s174, %s175
    %p184 = scmp.eq.s32.totalorder %s17, 0
    %p185 = por %p183, %p184
    %p186 = scmp.ne.s32.totalorder %s174, %s175
    %p187 = scmp.eq.s32.totalorder %s18, 1
    %p188 = por %p186, %p187
    %p190 = scmp.ne.s32.totalorder %s175, %s189
    %p191 = scmp.eq.s32.totalorder %s18, 0
    %p192 = por %p190, %p191
    %s193 = ssub.s32 %s19, %s38
    %s194 = ssub.s32 %s20, %s34
    %s195 = sor.u32 %s193, %s194
    %p196 = scmp.eq.s32.totalorder %s195, 0
    %s198 = sadd.s32 %s197, 1
    %s199 = scalar_select %p196, %s197, %s198
    %p202 = pneg %p196
    %p203 = scmp.eq.s32.totalorder %s12, 1
    %p204 = por %p202, %p203
    %p205 = scmp.ne.s32.totalorder %s197, %s200
    %p206 = scmp.eq.s32.totalorder %s12, 0
    %p207 = por %p205, %p206
    %p208 = scmp.ne.s32.totalorder %s197, %s200
    %p209 = scmp.eq.s32.totalorder %s17, 1
    %p210 = por %p208, %p209
    %p211 = scmp.ne.s32.totalorder %s200, %s201
    %p212 = scmp.eq.s32.totalorder %s17, 0
    %p213 = por %p211, %p212
    %p214 = scmp.ne.s32.totalorder %s200, %s201
    %p215 = scmp.eq.s32.totalorder %s18, 1
    %p216 = por %p214, %p215
    %p218 = scmp.ne.s32.totalorder %s201, %s217
    %p219 = scmp.eq.s32.totalorder %s18, 0
    %p220 = por %p218, %p219
    %p221 = scmp.le.s32.totalorder 1, %s12
    %p222 = scmp.lt.s32.totalorder %s12, 3
    %p223 = pnand %p221, %p222
    %p224 = pneg %p223
    // Predicated region
    $region9: #{bc_lm_forward.8} parent=5 // pred_check
      _
    $region10: #{bc_lm_forward.8} parent=5 // pred_check_branch
      %226 = sbr.rel (%p223) target = $region12
    $region11: #{bc_lm_forward.8} parent=5 // pred_region
      %s227 = ssub.s32 %s12, 1
      // Predicated region
      $region13: #{bc_lm_forward.8} parent=11 // pred_check
        %p228 = pneg %p164
      $region14: #{bc_lm_forward.8} parent=11 // pred_check_branch
        %230 = sbr.rel (%p228) target = $region16
      $region15: #{bc_lm_forward.8} parent=11 // pred_region
        _
      $region16: #{bc_lm_forward.8} parent=11 // pred_fallthru
        _
      // Predicated region
      $region17: #{bc_lm_forward.8} parent=11 // pred_check
        %p231 = pneg %p185
      $region18: #{bc_lm_forward.8} parent=11 // pred_check_branch
        %233 = sbr.rel (%p231) target = $region20
      $region19: #{bc_lm_forward.8} parent=11 // pred_region
        _
      $region20: #{bc_lm_forward.8} parent=11 // pred_fallthru
        _
    $region12: #{bc_lm_forward.8} parent=5 // pred_fallthru
      _
    %p234 = scmp.lt.s32.totalorder %s12, 2
    // Predicated region
    $region21: #{bc_lm_forward.8} parent=5 // pred_check
      %p235 = pneg %p234
    $region22: #{bc_lm_forward.8} parent=5 // pred_check_branch
      %237 = sbr.rel (%p235) target = $region24
    $region23: #{bc_lm_forward.8} parent=5 // pred_region
      // Predicated region
      $region25: #{bc_lm_forward.8} parent=23 // pred_check
        %p238 = pneg %p53
      $region26: #{bc_lm_forward.8} parent=23 // pred_check_branch
        %240 = sbr.rel (%p238) target = $region28
      $region27: #{bc_lm_forward.8} parent=23 // pred_region
        %p241 = scmp.lt.s32.totalorder %s19, 1
        %s242 = scalar_select %p241, %s19, 1
        %p243 = scmp.lt.s32.totalorder %s20, 0
        %s244 = scalar_select %p243, %s20, 0
        %s245 = sadd.s32 %s244, %s242
        %s246 = smul.addr %s245, 4
        %s247 = scalar_lea.vmem %s0, %s246
      $region28: #{bc_lm_forward.8} parent=23 // pred_fallthru
        _
      // Predicated region
      $region29: #{bc_lm_forward.8} parent=23 // pred_check
        %p248 = pneg %p81
      $region30: #{bc_lm_forward.8} parent=23 // pred_check_branch
        %250 = sbr.rel (%p248) target = $region32
      $region31: #{bc_lm_forward.8} parent=23 // pred_region
        %p251 = scmp.lt.s32.totalorder %s19, 1
        %s252 = scalar_select %p251, %s19, 1
        %p253 = scmp.lt.s32.totalorder %s20, 0
        %s254 = scalar_select %p253, %s20, 0
        %s255 = sadd.s32 %s254, %s252
        %s256 = smul.addr %s255, 4
        %s257 = scalar_lea.vmem %s1, %s256
      $region32: #{bc_lm_forward.8} parent=23 // pred_fallthru
        _
      // Predicated region
      $region33: #{bc_lm_forward.8} parent=23 // pred_check
        %p258 = pneg %p109
      $region34: #{bc_lm_forward.8} parent=23 // pred_check_branch
        %260 = sbr.rel (%p258) target = $region36
      $region35: #{bc_lm_forward.8} parent=23 // pred_region
        %p261 = scmp.lt.s32.totalorder %s19, 1
        %s262 = scalar_select %p261, %s19, 1
        %p263 = scmp.lt.s32.totalorder %s21, 0
        %s264 = scalar_select %p263, %s21, 0
        %s265 = sadd.s32 %s264, %s262
        %s266 = smul.addr %s265, 4
        %s267 = scalar_lea.vmem %s2, %s266
      $region36: #{bc_lm_forward.8} parent=23 // pred_fallthru
        _
      // Predicated region
      $region37: #{bc_lm_forward.8} parent=23 // pred_check
        %p268 = pneg %p137
      $region38: #{bc_lm_forward.8} parent=23 // pred_check_branch
        %270 = sbr.rel (%p268) target = $region40
      $region39: #{bc_lm_forward.8} parent=23 // pred_region
        %p271 = scmp.lt.s32.totalorder %s19, 1
        %s272 = scalar_select %p271, %s19, 1
        %p273 = scmp.lt.s32.totalorder %s21, 0
        %s274 = scalar_select %p273, %s21, 0
        %s275 = sadd.s32 %s274, %s272
        %s276 = smul.addr %s275, 4
        %s277 = scalar_lea.vmem %s3, %s276
      $region40: #{bc_lm_forward.8} parent=23 // pred_fallthru
        _
    $region24: #{bc_lm_forward.8} parent=5 // pred_fallthru
      _
    %p278 = scmp.le.s32.totalorder 1, %s12
    %p279 = scmp.lt.s32.totalorder %s12, 3
    %p280 = pnand %p278, %p279
    %p281 = pneg %p280
    // Predicated region
    $region41: #{bc_lm_forward.8} parent=5 // pred_check
      _
    $region42: #{bc_lm_forward.8} parent=5 // pred_check_branch
      %283 = sbr.rel (%p280) target = $region44
    $region43: #{bc_lm_forward.8} parent=5 // pred_region
      %s284 = ssub.s32 %s12, 1
      %p285 = scmp.lt.s32.totalorder %s22, 1
      %s286 = scalar_select %p285, %s22, 1
      %p287 = scmp.lt.s32.totalorder %s23, 0
      %s288 = scalar_select %p287, %s23, 0
      %s289 = sadd.s32 %s288, %s286
      %s290 = smul.addr %s289, 4
      %s291 = scalar_lea.vmem %s0, %s290
      %p292 = pneg %p59
      %p293 = pneg %p56
      %p294 = scmp.lt.s32.totalorder %s22, 1
      %s295 = scalar_select %p294, %s22, 1
      %p296 = scmp.lt.s32.totalorder %s23, 0
      %s297 = scalar_select %p296, %s23, 0
      %s298 = sadd.s32 %s297, %s295
      %s299 = smul.addr %s298, 4
      %s300 = scalar_lea.vmem %s1, %s299
      %p301 = pneg %p87
      %p302 = pneg %p84
      %p303 = scmp.lt.s32.totalorder %s22, 1
      %s304 = scalar_select %p303, %s22, 1
      %p305 = scmp.lt.s32.totalorder %s24, 0
      %s306 = scalar_select %p305, %s24, 0
      %s307 = sadd.s32 %s306, %s304
      %s308 = smul.addr %s307, 4
      %s309 = scalar_lea.vmem %s2, %s308
      %p310 = pneg %p115
      %p311 = pneg %p112
      %p312 = scmp.lt.s32.totalorder %s22, 1
      %s313 = scalar_select %p312, %s22, 1
      %p314 = scmp.lt.s32.totalorder %s24, 0
      %s315 = scalar_select %p314, %s24, 0
      %s316 = sadd.s32 %s315, %s313
      %s317 = smul.addr %s316, 4
      %s318 = scalar_lea.vmem %s3, %s317
      %p319 = pneg %p143
      %p320 = pneg %p140
      %p321 = pneg %p164
      %p322 = pneg %p161
      %p323 = pneg %p185
      %p324 = pneg %p182
      %p325 = pneg %p213
      %p326 = pneg %p210
      %p327 = scmp.lt.s32.totalorder %s22, 1
      %s328 = scalar_select %p327, %s22, 1
      %p329 = scmp.lt.s32.totalorder %s23, 0
      %s330 = scalar_select %p329, %s23, 0
      %s331 = sadd.s32 %s330, %s328
      %s332 = smul.addr %s331, 4
      %s333 = scalar_lea.vmem %s6, %s332
      %p334 = scmp.lt.s32.totalorder %s22, 1
      %s335 = scalar_select %p334, %s22, 1
      %p336 = scmp.lt.s32.totalorder %s23, 0
      %s337 = scalar_select %p336, %s23, 0
      %s338 = sadd.s32 %s337, %s335
      %s339 = smul.addr %s338, 4
      %s340 = scalar_lea.vmem %s0, %s339
      %p341 = scmp.lt.s32.totalorder %s22, 1
      %s342 = scalar_select %p341, %s22, 1
      %p343 = scmp.lt.s32.totalorder %s23, 0
      %s344 = scalar_select %p343, %s23, 0
      %s345 = sadd.s32 %s344, %s342
      %s346 = smul.addr %s345, 4
      %s347 = scalar_lea.vmem %s1, %s346
      %p348 = scmp.lt.s32.totalorder %s22, 1
      %s349 = scalar_select %p348, %s22, 1
      %p350 = scmp.lt.s32.totalorder %s24, 0
      %s351 = scalar_select %p350, %s24, 0
      %s352 = sadd.s32 %s351, %s349
      %s353 = smul.addr %s352, 4
      %s354 = scalar_lea.vmem %s2, %s353
      %p355 = scmp.lt.s32.totalorder %s22, 1
      %s356 = scalar_select %p355, %s22, 1
      %p357 = scmp.lt.s32.totalorder %s24, 0
      %s358 = scalar_select %p357, %s24, 0
      %s359 = sadd.s32 %s358, %s356
      %s360 = smul.addr %s359, 4
      %s361 = scalar_lea.vmem %s3, %s360
      %p362 = scmp.lt.s32.totalorder %s22, 1
      %s363 = scalar_select %p362, %s22, 1
      %p364 = scmp.lt.s32.totalorder %s23, 0
      %s365 = scalar_select %p364, %s23, 0
      %s366 = sadd.s32 %s365, %s363
      %s367 = smul.addr %s366, 4
      %s368 = scalar_lea.vmem %s6, %s367
      %p370 = scmp.eq.s32.totalorder %s24, 0
      // Predicated region
      $region45: #{bc_lm_forward.8} parent=43 // pred_check
        %p371 = pneg %p370
      $region46: #{bc_lm_forward.8} parent=43 // pred_check_branch
        %373 = sbr.rel (%p371) target = $region48
      $region47: #{bc_lm_forward.8} parent=43 // pred_region
        %v374 = vld [vmem:[%s347] sm:$0xf]
        %376 = vrot.lane.b32.xlu0 %v374, 112
        %v377 = vpop.permute.xlu0 %376
        %v380 = vpack.i.b16 %v377, %v374
        %v381 = vshrl.u32 %v374, 16
        %v382 = vshrl.u32 %v377, 16
        %v383 = vpack.i.b16 %v382, %v381
        %v386 = vunpack.c.l.s4 1983009808
        %v387 = vunpack.c.0.s8 %v386
        %v388 = vperm.slane %v380, %v387
        %v389 = vrot.slane %v388, 4
        %vm390 = vcmask 1047556
        %v391 = vsel %vm390, 0, %v389
        %v393 = vunpack.c.l.s4 1934713408
        %v394 = vunpack.c.0.s8 %v393
        %v395 = vperm.slane %v388, %v394
        %v397 = vunpack.c.l.s4 1934713408
        %v398 = vunpack.c.0.s8 %v397
        %v399 = vperm.slane %v391, %v398
        %v400 = vrot.slane %v395, 4
        %v401 = vsel %vm390, 0, %v400
        %v402 = vrot.slane %v399, 4
        %v403 = vsel %vm390, 0, %v402
        %v406 = vunpack.c.l.s4 1983009808
        %v407 = vunpack.c.0.s8 %v406
        %v408 = vperm.slane %v383, %v407
        %v409 = vrot.slane %v408, 4
        %v410 = vsel %vm390, 0, %v409
        %v412 = vunpack.c.l.s4 1934713408
        %v413 = vunpack.c.0.s8 %v412
        %v414 = vperm.slane %v408, %v413
        %v416 = vunpack.c.l.s4 1934713408
        %v417 = vunpack.c.0.s8 %v416
        %v418 = vperm.slane %v410, %v417
        %v419 = vrot.slane %v414, 4
        %v420 = vsel %vm390, 0, %v419
        %v421 = vrot.slane %v418, 4
        %v422 = vsel %vm390, 0, %v421
        %v423 = vsel %vm390, %v402, %v395
        %v425 = vunpack.c.l.s4 1983009808
        %v426 = vunpack.c.0.s8 %v425
        %v427 = vperm.slane %v423, %v426
        %v428 = vrot.slane %v403, 4
        %v429 = vsel %vm390, %v428, %v401
        %v431 = vunpack.c.l.s4 1983009808
        %v432 = vunpack.c.0.s8 %v431
        %v433 = vperm.slane %v429, %v432
        %v434 = vrot.slane %v433, 4
        %v435 = vsel %vm390, %v434, %v427
        %v437 = vunpack.c.l.s4 1934713408
        %v438 = vunpack.c.0.s8 %v437
        %v439 = vperm.slane %v435, %v438
        %v440 = vsel %vm390, %v421, %v414
        %v442 = vunpack.c.l.s4 1983009808
        %v443 = vunpack.c.0.s8 %v442
        %v444 = vperm.slane %v440, %v443
        %v445 = vrot.slane %v422, 4
        %v446 = vsel %vm390, %v445, %v420
        %v448 = vunpack.c.l.s4 1983009808
        %v449 = vunpack.c.0.s8 %v448
        %v450 = vperm.slane %v446, %v449
        %v451 = vrot.slane %v450, 4
        %v452 = vsel %vm390, %v451, %v444
        %v454 = vunpack.c.l.s4 1934713408
        %v455 = vunpack.c.0.s8 %v454
        %v456 = vperm.slane %v452, %v455
        %v459 = vpack.i.b16 %v456, %v439
        %v461 = vshrl.u32 %v439, 16
        %v462 = vshrl.u32 %v456, 16
        %v463 = vpack.i.b16 %v462, %v461
        %vm465 = vcmask 125952
        %466 = vst.msk [vmem:[#allocation2] sm:$0xf] %vm465, %v459
        %467 = vst.msk [vmem:[#allocation2 + $0x4] sm:$0xf] %vm465, %v463
        %vm468 = vcmask 7168
        %469 = vst.msk [vmem:[#allocation3] sm:$0xff] %vm468, -inf
        %470 = vst.msk [vmem:[#allocation3 + $0x8] sm:$0xff] %vm468, -inf
        %471 = vst.msk [vmem:[#allocation4] sm:$0xff] %vm468, 0.0
        %472 = vst.msk [vmem:[#allocation4 + $0x8] sm:$0xff] %vm468, 0.0
        %vm473 = vcmask 130048
        %474 = vst.msk [vmem:[#allocation5] sm:$0xff] %vm473, 0.0
        %475 = vst.msk [vmem:[#allocation5 + $0x8] sm:$0xff] %vm473, 0.0
      $region48: #{bc_lm_forward.8} parent=43 // pred_fallthru
        _
      %s476 = smul.u32 %s24, 8
      %s477 = sadd.s32 %s23, 1
      %s478 = smul.u32 %s477, 8
      %p479 = scmp.lt.s32.totalorder %s476, %s478
      // Predicated region
      $region49: #{bc_lm_forward.8} parent=43 // pred_check
        %p480 = pneg %p479
      $region50: #{bc_lm_forward.8} parent=43 // pred_check_branch
        %482 = sbr.rel (%p480) target = $region52
      $region51: #{bc_lm_forward.8} parent=43 // pred_region
        %v483 = vld [vmem:[%s354] sm:$0xf]
        %485 = vrot.lane.b32.xlu0 %v483, 112
        %v486 = vpop.permute.xlu0 %485
        %v489 = vpack.i.b16 %v486, %v483
        %v490 = vshrl.u32 %v483, 16
        %v491 = vshrl.u32 %v486, 16
        %v492 = vpack.i.b16 %v491, %v490
        %v495 = vunpack.c.l.s4 1983009808
        %v496 = vunpack.c.0.s8 %v495
        %v497 = vperm.slane %v489, %v496
        %v498 = vrot.slane %v497, 4
        %vm499 = vcmask 1047556
        %v500 = vsel %vm499, 0, %v498
        %v502 = vunpack.c.l.s4 1934713408
        %v503 = vunpack.c.0.s8 %v502
        %v504 = vperm.slane %v497, %v503
        %v506 = vunpack.c.l.s4 1934713408
        %v507 = vunpack.c.0.s8 %v506
        %v508 = vperm.slane %v500, %v507
        %v509 = vrot.slane %v504, 4
        %v510 = vsel %vm499, 0, %v509
        %v511 = vrot.slane %v508, 4
        %v512 = vsel %vm499, 0, %v511
        %v515 = vunpack.c.l.s4 1983009808
        %v516 = vunpack.c.0.s8 %v515
        %v517 = vperm.slane %v492, %v516
        %v518 = vrot.slane %v517, 4
        %v519 = vsel %vm499, 0, %v518
        %v521 = vunpack.c.l.s4 1934713408
        %v522 = vunpack.c.0.s8 %v521
        %v523 = vperm.slane %v517, %v522
        %v525 = vunpack.c.l.s4 1934713408
        %v526 = vunpack.c.0.s8 %v525
        %v527 = vperm.slane %v519, %v526
        %v528 = vrot.slane %v523, 4
        %v529 = vsel %vm499, 0, %v528
        %v530 = vrot.slane %v527, 4
        %v531 = vsel %vm499, 0, %v530
        %v532 = vsel %vm499, %v511, %v504
        %v534 = vunpack.c.l.s4 1983009808
        %v535 = vunpack.c.0.s8 %v534
        %v536 = vperm.slane %v532, %v535
        %v537 = vrot.slane %v512, 4
        %v538 = vsel %vm499, %v537, %v510
        %v540 = vunpack.c.l.s4 1983009808
        %v541 = vunpack.c.0.s8 %v540
        %v542 = vperm.slane %v538, %v541
        %v543 = vrot.slane %v542, 4
        %v544 = vsel %vm499, %v543, %v536
        %v546 = vunpack.c.l.s4 1934713408
        %v547 = vunpack.c.0.s8 %v546
        %v548 = vperm.slane %v544, %v547
        %v549 = vsel %vm499, %v530, %v523
        %v551 = vunpack.c.l.s4 1983009808
        %v552 = vunpack.c.0.s8 %v551
        %v553 = vperm.slane %v549, %v552
        %v554 = vrot.slane %v531, 4
        %v555 = vsel %vm499, %v554, %v529
        %v557 = vunpack.c.l.s4 1983009808
        %v558 = vunpack.c.0.s8 %v557
        %v559 = vperm.slane %v555, %v558
        %v560 = vrot.slane %v559, 4
        %v561 = vsel %vm499, %v560, %v553
        %v563 = vunpack.c.l.s4 1934713408
        %v564 = vunpack.c.0.s8 %v563
        %v565 = vperm.slane %v561, %v564
        %v568 = vpack.i.b16 %v565, %v548
        %v569 = vshrl.u32 %v548, 16
        %v570 = vshrl.u32 %v565, 16
        %v571 = vpack.i.b16 %v570, %v569
        %v572 = vld [vmem:[%s361] sm:$0xf]
        %574 = vrot.lane.b32.xlu0 %v572, 112
        %v575 = vpop.permute.xlu0 %574
        %v578 = vpack.i.b16 %v575, %v572
        %v579 = vshrl.u32 %v572, 16
        %v580 = vshrl.u32 %v575, 16
        %v581 = vpack.i.b16 %v580, %v579
        %v584 = vunpack.c.l.s4 1983009808
        %v585 = vunpack.c.0.s8 %v584
        %v586 = vperm.slane %v578, %v585
        %v587 = vrot.slane %v586, 4
        %v588 = vsel %vm499, 0, %v587
        %v590 = vunpack.c.l.s4 1934713408
        %v591 = vunpack.c.0.s8 %v590
        %v592 = vperm.slane %v586, %v591
        %v594 = vunpack.c.l.s4 1934713408
        %v595 = vunpack.c.0.s8 %v594
        %v596 = vperm.slane %v588, %v595
        %v597 = vrot.slane %v592, 4
        %v598 = vsel %vm499, 0, %v597
        %v599 = vrot.slane %v596, 4
        %v600 = vsel %vm499, 0, %v599
        %v603 = vunpack.c.l.s4 1983009808
        %v604 = vunpack.c.0.s8 %v603
        %v605 = vperm.slane %v581, %v604
        %v606 = vrot.slane %v605, 4
        %v607 = vsel %vm499, 0, %v606
        %v609 = vunpack.c.l.s4 1934713408
        %v610 = vunpack.c.0.s8 %v609
        %v611 = vperm.slane %v605, %v610
        %v613 = vunpack.c.l.s4 1934713408
        %v614 = vunpack.c.0.s8 %v613
        %v615 = vperm.slane %v607, %v614
        %v616 = vrot.slane %v611, 4
        %v617 = vsel %vm499, 0, %v616
        %v618 = vrot.slane %v615, 4
        %v619 = vsel %vm499, 0, %v618
        %v620 = vsel %vm499, %v599, %v592
        %v622 = vunpack.c.l.s4 1983009808
        %v623 = vunpack.c.0.s8 %v622
        %v624 = vperm.slane %v620, %v623
        %v625 = vrot.slane %v600, 4
        %v626 = vsel %vm499, %v625, %v598
        %v628 = vunpack.c.l.s4 1983009808
        %v629 = vunpack.c.0.s8 %v628
        %v630 = vperm.slane %v626, %v629
        %v631 = vrot.slane %v630, 4
        %v632 = vsel %vm499, %v631, %v624
        %v634 = vunpack.c.l.s4 1934713408
        %v635 = vunpack.c.0.s8 %v634
        %v636 = vperm.slane %v632, %v635
        %v637 = vsel %vm499, %v618, %v611
        %v639 = vunpack.c.l.s4 1983009808
        %v640 = vunpack.c.0.s8 %v639
        %v641 = vperm.slane %v637, %v640
        %v642 = vrot.slane %v619, 4
        %v643 = vsel %vm499, %v642, %v617
        %v645 = vunpack.c.l.s4 1983009808
        %v646 = vunpack.c.0.s8 %v645
        %v647 = vperm.slane %v643, %v646
        %v648 = vrot.slane %v647, 4
        %v649 = vsel %vm499, %v648, %v641
        %v651 = vunpack.c.l.s4 1934713408
        %v652 = vunpack.c.0.s8 %v651
        %v653 = vperm.slane %v649, %v652
        %v656 = vpack.i.b16 %v653, %v636
        %v657 = vshrl.u32 %v636, 16
        %v658 = vshrl.u32 %v653, 16
        %v659 = vpack.i.b16 %v658, %v657
        %v660 = vld [vmem:[#allocation2] sm:$0xf]
        %v661 = vld [vmem:[#allocation2 + $0x4] sm:$0xf]
        %vm662 = vcmask 130048
        %v664 = vsel %vm662, %v660, 0
        %v667 = vsel %vm662, %v568, 0
        %669 = vmatpush.bf16.xpose.msra.mxu0 0
        %670 = vmatpush.bf16.xpose.msra.mxu0 0
        %671 = vmatpush.bf16.xpose.msra.mxu0 0
        %672 = vmatpush.bf16.xpose.msra.mxu0 0
        %673 = vmatpush.bf16.xpose.msra.mxu0 0
        %674 = vmatpush.bf16.xpose.msra.mxu0 0
        %675 = vmatpush.bf16.xpose.msra.mxu0 0
        %676 = vmatpush.bf16.xpose.msra.mxu0 %v667
        %677 = vmatmul.bf16.gmra.mxu0 %v664
        %v678 = vpop.f32.mrf.mxu0
        %v679 = vadd.f32 0.0, %v678
        %v680 = vpop.f32.mrf.mxu0
        %681 = vdwg.mxu0
        %v683 = vsel %vm662, %v661, 0
        %v686 = vsel %vm662, %v571, 0
        %688 = vmatpush.bf16.xpose.msra.mxu0 0
        %689 = vmatpush.bf16.xpose.msra.mxu0 0
        %690 = vmatpush.bf16.xpose.msra.mxu0 0
        %691 = vmatpush.bf16.xpose.msra.mxu0 0
        %692 = vmatpush.bf16.xpose.msra.mxu0 0
        %693 = vmatpush.bf16.xpose.msra.mxu0 0
        %694 = vmatpush.bf16.xpose.msra.mxu0 0
        %695 = vmatpush.bf16.xpose.msra.mxu0 %v686
        %696 = vmatmul.bf16.gmra.mxu0 %v683
        %v697 = vpop.f32.mrf.mxu0
        %v698 = vadd.f32 0.0, %v697
        %v699 = vpop.f32.mrf.mxu0
        %700 = vdwg.mxu0
        %s701 = smul.u32 %s23, 8
        %v702 = vlaneseq
        %v703 = vshrl.u32 %v702, 7
        %v704 = vstv %s701
        %v705 = vadd.s32 %v704, %v703
        %v706 = vlaneseq
        %v707 = vand.u32 %v706, 127
        %v708 = vstv %s476
        %v709 = vadd.s32 %v708, %v707
        %vm710 = vcmp.ge.s32.totalorder %v705, %v709
        %v711 = vsel %vm710, 1, 0
        %vm712 = vcmp.eq.s32.totalorder %v711, 1
        %v713 = vsel %vm712, %v679, -1e+30
        %v714 = vsel %vm712, %v698, -1e+30
        %v715 = vld [vmem:[#allocation3] sm:$0xff]
        %v716 = vld [vmem:[#allocation3 + $0x8] sm:$0xff]
        %vm717 = vcmask 64512
        %v718 = vsel %vm717, %v713, -inf
        %719 = vmax.xlane.f32.xlu0 %v718
        %v720 = vpop.xlane.xlu0 %719
        %v721 = vsel %vm717, %v714, -inf
        %722 = vmax.xlane.f32.xlu0 %v721
        %v723 = vpop.xlane.xlu0 %722
        %v724 = vmax.f32 %v715, %v720
        %v725 = vmax.f32 %v716, %v723
        %v726 = vsub.f32 %v715, %v724
        %v727 = vsub.f32 %v716, %v725
        %v728 = vmul.f32 %v726, 1.442695
        %v729 = vpow.pop %v728
        %v730 = vmul.f32 %v727, 1.442695
        %v731 = vpow.pop %v730
        %733 = vset.pattern.permute.xlu0 0
        %734 = vperm.xlu0 %733, %v724
        %v735 = vpop.permute.xlu0 %734
        %738 = vset.pattern.permute.xlu0 0
        %739 = vperm.xlu0 %738, %v725
        %v740 = vpop.permute.xlu0 %739
        %v742 = vsub.f32 %v713, %v735
        %v743 = vsub.f32 %v714, %v740
        %v744 = vmul.f32 %v742, 1.442695
        %v745 = vpow.pop %v744
        %v746 = vmul.f32 %v743, 1.442695
        %v747 = vpow.pop %v746
        %v748 = vld [vmem:[#allocation4] sm:$0xff]
        %v749 = vld [vmem:[#allocation4 + $0x8] sm:$0xff]
        %v750 = vmul.f32 %v729, %v748
        %v751 = vmul.f32 %v731, %v749
        %v752 = vsel %vm717, %v745, 0.0
        %753 = vadd.xlane.f32.xlu0 %v752
        %v754 = vpop.xlane.xlu0 %753
        %v755 = vsel %vm717, %v747, 0.0
        %756 = vadd.xlane.f32.xlu0 %v755
        %v757 = vpop.xlane.xlu0 %756
        %v758 = vadd.f32 %v750, %v754
        %v759 = vadd.f32 %v751, %v757
        %vm760 = vcmask 7168
        %761 = vst.msk [vmem:[#allocation4] sm:$0xff] %vm760, %v758
        %762 = vst.msk [vmem:[#allocation4 + $0x8] sm:$0xff] %vm760, %v759
        %v763 = vld [vmem:[#allocation5] sm:$0xff]
        %v764 = vld [vmem:[#allocation5 + $0x8] sm:$0xff]
        %766 = vset.pattern.permute.xlu0 0
        %767 = vperm.xlu0 %766, %v729
        %v768 = vpop.permute.xlu0 %767
        %771 = vset.pattern.permute.xlu0 0
        %772 = vperm.xlu0 %771, %v731
        %v773 = vpop.permute.xlu0 %772
        %v775 = vmul.f32 %v768, %v763
        %v776 = vmul.f32 %v773, %v764
        %v777 = vpack.c.bf16 %v745, %v745
        %v778 = vpack.c.bf16 %v747, %v747
        %v780 = vsel %vm717, %v777, 0
        %vm782 = vcmask 1043456
        %v784 = vsel %vm782, %v656, 0
        %786 = vmatpush.bf16.msra.mxu0 0
        %787 = vmatpush.bf16.msra.mxu0 0
        %788 = vmatpush.bf16.msra.mxu0 0
        %789 = vmatpush.bf16.msra.mxu0 0
        %790 = vmatpush.bf16.msra.mxu0 0
        %791 = vmatpush.bf16.msra.mxu0 0
        %792 = vmatpush.bf16.msra.mxu0 0
        %793 = vmatpush.bf16.msra.mxu0 %v784
        %794 = vmatmul.bf16.gmra.mxu0 %v780
        %v795 = vpop.f32.mrf.mxu0
        %v796 = vadd.f32 0.0, %v795
        %v797 = vpop.f32.mrf.mxu0
        %798 = vdwg.mxu0
        %v800 = vsel %vm717, %v778, 0
        %v803 = vsel %vm782, %v659, 0
        %805 = vmatpush.bf16.msra.mxu0 0
        %806 = vmatpush.bf16.msra.mxu0 0
        %807 = vmatpush.bf16.msra.mxu0 0
        %808 = vmatpush.bf16.msra.mxu0 0
        %809 = vmatpush.bf16.msra.mxu0 0
        %810 = vmatpush.bf16.msra.mxu0 0
        %811 = vmatpush.bf16.msra.mxu0 0
        %812 = vmatpush.bf16.msra.mxu0 %v803
        %813 = vmatmul.bf16.gmra.mxu0 %v800
        %v814 = vpop.f32.mrf.mxu0
        %v815 = vadd.f32 0.0, %v814
        %v816 = vpop.f32.mrf.mxu0
        %817 = vdwg.mxu0
        %v818 = vadd.f32 %v775, %v796
        %v819 = vadd.f32 %v776, %v815
        %820 = vst.msk [vmem:[#allocation5] sm:$0xff] %vm662, %v818
        %821 = vst.msk [vmem:[#allocation5 + $0x8] sm:$0xff] %vm662, %v819
        %822 = vst.msk [vmem:[#allocation3] sm:$0xff] %vm760, %v724
        %823 = vst.msk [vmem:[#allocation3 + $0x8] sm:$0xff] %vm760, %v725
      $region52: #{bc_lm_forward.8} parent=43 // pred_fallthru
        _
      // Predicated region
      $region53: #{bc_lm_forward.8} parent=43 // pred_check
        %p824 = pneg %p370
      $region54: #{bc_lm_forward.8} parent=43 // pred_check_branch
        %826 = sbr.rel (%p824) target = $region56
      $region55: #{bc_lm_forward.8} parent=43 // pred_region
        %v827 = vld [vmem:[#allocation5] sm:$0xff]
        %v828 = vld [vmem:[#allocation5 + $0x8] sm:$0xff]
        %v829 = vld [vmem:[#allocation4] sm:$0xff]
        %v830 = vld [vmem:[#allocation4 + $0x8] sm:$0xff]
        %v831 = vrcp.pop %v829
        %v832 = vmul.f32 %v829, %v831
        %v833 = vsub.f32 1.0, %v832
        %v834 = vmul.f32 %v831, %v833
        %v835 = vadd.f32 %v831, %v834
        %vm836 = vweird.f32 %v829
        %vm837 = vweird.f32 %v831
        %vm838 = vmor %vm836, %vm837
        %v839 = vsel %vm838, %v831, %v835
        %v840 = vand.u32 2147483647, %v829
        %vm841 = vcmp.eq.f32.partialorder %v840, 8.507059e+37
        %v842 = vand.u32 %v829, 2147483648
        %v843 = vor.u32 1.1754944e-38, %v842
        %v844 = vsel %vm841, %v843, %v839
        %v845 = vrcp.pop %v830
        %v846 = vmul.f32 %v830, %v845
        %v847 = vsub.f32 1.0, %v846
        %v848 = vmul.f32 %v845, %v847
        %v849 = vadd.f32 %v845, %v848
        %vm850 = vweird.f32 %v830
        %vm851 = vweird.f32 %v845
        %vm852 = vmor %vm850, %vm851
        %v853 = vsel %vm852, %v845, %v849
        %v854 = vand.u32 2147483647, %v830
        %vm855 = vcmp.eq.f32.partialorder %v854, 8.507059e+37
        %v856 = vand.u32 %v830, 2147483648
        %v857 = vor.u32 1.1754944e-38, %v856
        %v858 = vsel %vm855, %v857, %v853
        %860 = vset.pattern.permute.xlu0 0
        %861 = vperm.xlu0 %860, %v844
        %v862 = vpop.permute.xlu0 %861
        %865 = vset.pattern.permute.xlu0 0
        %866 = vperm.xlu0 %865, %v858
        %v867 = vpop.permute.xlu0 %866
        %v869 = vmul.f32 %v827, %v862
        %v870 = vmul.f32 %v828, %v867
        %v871 = vrot.slane %v869, 4
        %vm872 = vcmask 1047556
        %v873 = vsel %vm872, 0.0, %v871
        %v875 = vunpack.c.l.s4 1983009808
        %v876 = vunpack.c.0.s8 %v875
        %v877 = vperm.slane %v869, %v876
        %v879 = vunpack.c.l.s4 1983009808
        %v880 = vunpack.c.0.s8 %v879
        %v881 = vperm.slane %v873, %v880
        %v882 = vrot.slane %v870, 4
        %v883 = vsel %vm872, 0.0, %v882
        %v885 = vunpack.c.l.s4 1983009808
        %v886 = vunpack.c.0.s8 %v885
        %v887 = vperm.slane %v870, %v886
        %v889 = vunpack.c.l.s4 1983009808
        %v890 = vunpack.c.0.s8 %v889
        %v891 = vperm.slane %v883, %v890
        %v892 = vrot.slane %v887, 4
        %v893 = vsel %vm872, %v892, %v877
        %v894 = vrot.slane %v877, 4
        %v895 = vsel %vm872, %v887, %v894
        %v897 = vunpack.c.l.s4 1934713408
        %v898 = vunpack.c.0.s8 %v897
        %v899 = vperm.slane %v893, %v898
        %v901 = vunpack.c.l.s4 1934713408
        %v902 = vunpack.c.0.s8 %v901
        %v903 = vperm.slane %v895, %v902
        %v904 = vrot.slane %v891, 4
        %v905 = vsel %vm872, %v904, %v881
        %v906 = vrot.slane %v881, 4
        %v907 = vsel %vm872, %v891, %v906
        %v909 = vunpack.c.l.s4 1934713408
        %v910 = vunpack.c.0.s8 %v909
        %v911 = vperm.slane %v905, %v910
        %v913 = vunpack.c.l.s4 1934713408
        %v914 = vunpack.c.0.s8 %v913
        %v915 = vperm.slane %v907, %v914
        %v916 = vrot.slane %v899, 4
        %v917 = vsel %vm872, 0.0, %v916
        %v918 = vrot.slane %v903, 4
        %v919 = vsel %vm872, 0.0, %v918
        %v920 = vrot.slane %v911, 4
        %v921 = vsel %vm872, 0.0, %v920
        %v922 = vrot.slane %v915, 4
        %v923 = vsel %vm872, 0.0, %v922
        %v924 = vsel %vm872, %v918, %v899
        %v926 = vunpack.c.l.s4 1983009808
        %v927 = vunpack.c.0.s8 %v926
        %v928 = vperm.slane %v924, %v927
        %v929 = vrot.slane %v919, 4
        %v930 = vsel %vm872, %v929, %v917
        %v932 = vunpack.c.l.s4 1983009808
        %v933 = vunpack.c.0.s8 %v932
        %v934 = vperm.slane %v930, %v933
        %v935 = vsel %vm872, %v922, %v911
        %v937 = vunpack.c.l.s4 1983009808
        %v938 = vunpack.c.0.s8 %v937
        %v939 = vperm.slane %v935, %v938
        %v940 = vrot.slane %v923, 4
        %v941 = vsel %vm872, %v940, %v921
        %v943 = vunpack.c.l.s4 1983009808
        %v944 = vunpack.c.0.s8 %v943
        %v945 = vperm.slane %v941, %v944
        %v946 = vrot.slane %v934, 4
        %v947 = vsel %vm872, %v946, %v928
        %v949 = vunpack.c.l.s4 1934713408
        %v950 = vunpack.c.0.s8 %v949
        %v951 = vperm.slane %v947, %v950
        %v952 = vrot.slane %v945, 4
        %v953 = vsel %vm872, %v952, %v939
        %v955 = vunpack.c.l.s4 1934713408
        %v956 = vunpack.c.0.s8 %v955
        %v957 = vperm.slane %v953, %v956
        %v958 = vrot.slane %v957, 4
        %v959 = vsel %vm872, %v958, %v951
        %v960 = vrot.slane %v951, 4
        %v961 = vsel %vm872, %v957, %v960
        %963 = vrot.lane.b32.xlu0 %v961, 16
        %v964 = vpop.permute.xlu0 %963
        %vm966 = vcmask 130048
        %v967 = vsel %vm966, %v959, %v964
        %v968 = vld [vmem:[%s340] sm:$0xf]
        %v969 = vunpack.c.l.bf16 %v968
        %v970 = vpack.c.bf16 %v967, %v967
        %v971 = vld [vmem:[%s4] sm:$0xf]
        %v972 = vld [vmem:[%s4 + $0x4] sm:$0xf]
        %v973 = vld [vmem:[%s4 + $0x8] sm:$0xf]
        %v974 = vld [vmem:[%s4 + $0xc] sm:$0xf]
        %v979 = vunpack.c.l.b16 %v971
        %v980 = vunpack.c.l.b16 %v972
        %v981 = vunpack.c.l.b16 %v973
        %v982 = vunpack.c.l.b16 %v974
        %v983 = vpack.c.b16 %v980, %v979
        %v984 = vpack.c.b16 %v982, %v981
        %vm987 = vcmask 261120
        %v989 = vsel %vm987, %v970, 0
        %991 = vmatpush.bf16.msra.mxu0 0
        %992 = vmatpush.bf16.msra.mxu0 0
        %993 = vmatpush.bf16.msra.mxu0 0
        %994 = vmatpush.bf16.msra.mxu0 0
        %995 = vmatpush.bf16.msra.mxu0 0
        %996 = vmatpush.bf16.msra.mxu0 0
        %997 = vmatpush.bf16.msra.mxu0 %v984
        %998 = vmatpush.bf16.msra.mxu0 %v983
        %999 = vmatmul.bf16.gmra.mxu0 %v989
        %v1000 = vpop.f32.mrf.mxu0
        %v1001 = vadd.f32 0.0, %v1000
        %v1002 = vpop.f32.mrf.mxu0
        %1003 = vdwg.mxu0
        %v1004 = vadd.f32 %v969, %v1001
        %v1005 = vld [vmem:[%s5] sm:$0x1]
        %v1007 = vperm.slane %v1005, 0
        %v1009 = vadd.f32 %v1004, %v1007
        %v1010 = vpack.c.bf16 %v1009, %v1009
        %vm1011 = vcmask 257024
        %1012 = vst.msk [vmem:[%s368] sm:$0xf] %vm1011, %v1010
      $region56: #{bc_lm_forward.8} parent=43 // pred_fallthru
        _
      %p1013 = scmp.lt.s32.totalorder %s22, 1
      %s1014 = scalar_select %p1013, %s22, 1
      %p1015 = scmp.lt.s32.totalorder %s23, 0
      %s1016 = scalar_select %p1015, %s23, 0
      %s1017 = sadd.s32 %s1016, %s1014
      %s1018 = smul.addr %s1017, 4
      %s1019 = scalar_lea.vmem %s6, %s1018
      // Predicated region
      $region57: #{bc_lm_forward.8} parent=43 // pred_check
        %p1020 = pneg %p210
      $region58: #{bc_lm_forward.8} parent=43 // pred_check_branch
        %1022 = sbr.rel (%p1020) target = $region60
      $region59: #{bc_lm_forward.8} parent=43 // pred_region
        _
      $region60: #{bc_lm_forward.8} parent=43 // pred_fallthru
        _
    $region44: #{bc_lm_forward.8} parent=5 // pred_fallthru
      _
    %p1023 = scmp.le.s32.totalorder 2, %s12
    // Predicated region
    $region61: #{bc_lm_forward.8} parent=5 // pred_check
      %p1024 = pneg %p1023
    $region62: #{bc_lm_forward.8} parent=5 // pred_check_branch
      %1026 = sbr.rel (%p1024) target = $region64
    $region63: #{bc_lm_forward.8} parent=5 // pred_region
      %s1027 = ssub.s32 %s12, 2
      // Predicated region
      $region65: #{bc_lm_forward.8} parent=63 // pred_check
        %p1028 = pneg %p216
      $region66: #{bc_lm_forward.8} parent=63 // pred_check_branch
        %1030 = sbr.rel (%p1028) target = $region68
      $region67: #{bc_lm_forward.8} parent=63 // pred_region
        %p1031 = scmp.lt.s32.totalorder %s25, 1
        %s1032 = scalar_select %p1031, %s25, 1
        %p1033 = scmp.lt.s32.totalorder %s26, 0
        %s1034 = scalar_select %p1033, %s26, 0
        %s1035 = sadd.s32 %s1034, %s1032
        %s1036 = smul.addr %s1035, 4
        %s1037 = scalar_lea.vmem %s6, %s1036
      $region68: #{bc_lm_forward.8} parent=63 // pred_fallthru
        _
    $region64: #{bc_lm_forward.8} parent=5 // pred_fallthru
      _
  $region6: #{bc_lm_forward.8} parent=0 // loop_footer
    %s16 = sadd.s32 1, %s12
  $region7: #{bc_lm_forward.8} parent=0 // loop_footer_branch
    %11 = sbr.rel target = $region3
  $region8: #{bc_lm_forward.8} parent=0 // loop_exit
    _

</llo_original>
